<compile_context>
chip_gen: v7x
topology: tpu7x:2x2x1
jax: 0.10.0
libtpu: 0.0.40
codegen_flags: <defaults>
</compile_context>

<pallas_src>
import collections
import functools
import math

import jax
import jax.numpy as jnp
from jax.experimental import pallas as pl
from jax.experimental.pallas import tpu as pltpu


GRUParams = collections.namedtuple(
    "GRUParams",
    ["wx_ri", "wh_ri", "wx_n", "wh_n", "b_ri", "b_xn", "b_hn", "compute_dtype"],
)


def gru_cell_kernel(x_ref, h_ref, wxri_ref, whri_ref, wxn_ref, whn_ref,
                    bri_ref, bxn_ref, bhn_ref, o_ref, *, hidden_size):
    """One batch tile of the GRU cell.

    x_ref   : [TB, In]         h_ref   : [TB, H]
    wxri_ref: [In, 2H]         whri_ref: [H, 2H]     (lane order: r | i)
    wxn_ref : [In, H]          whn_ref : [H, H]
    bri_ref : [1, 2H] f32 (bx_r+bh_r | bx_i+bh_i)
    bxn_ref : [1, H]  f32      bhn_ref : [1, H] f32
    o_ref   : [TB, H]
    """
    H = hidden_size
    x = x_ref[...]            # native (bf16) MXU operands
    h_native = h_ref[...]

    # Fused reset|input gates: one lane-dense [TB, 2H] accumulator, f32 acc.
    g_ri = jnp.dot(x, wxri_ref[...], preferred_element_type=jnp.float32)
    g_ri = g_ri + jnp.dot(h_native, whri_ref[...],
                          preferred_element_type=jnp.float32)
    ri = jax.nn.sigmoid(g_ri + bri_ref[...])          # biases already f32
    resetgate = ri[:, :H]
    inputgate = ri[:, H:]

    # Candidate gate: x- and h-contributions kept separate because bh_n sits
    # inside the reset-gated term:  n = tanh(i_n + bx_n + r * (h_n + bh_n)).
    gx_n = jnp.dot(x, wxn_ref[...], preferred_element_type=jnp.float32)
    gh_n = jnp.dot(h_native, whn_ref[...], preferred_element_type=jnp.float32)
    newgate = jnp.tanh(gx_n + bxn_ref[...] + resetgate * (gh_n + bhn_ref[...]))

    h = h_native.astype(jnp.float32)
    hy = newgate + inputgate * (h - newgate)
    o_ref[...] = hy.astype(o_ref.dtype)


def prepare_gru_params(wx, bx, wh, bh, compute_dtype=jnp.bfloat16):
    """One-time repack of PyTorch nn.Linear parameters (call once, not per step).

    wx : [3H, In]   bx : [3H]      (x2h.weight / x2h.bias, gate order r,i,n)
    wh : [3H, H]    bh : [3H]      (h2h.weight / h2h.bias)
    """
    H = wx.shape[0] // 3
    wx_t = jnp.asarray(wx, jnp.float32).T            # [In, 3H]
    wh_t = jnp.asarray(wh, jnp.float32).T            # [H,  3H]
    bx = jnp.asarray(bx, jnp.float32)
    bh = jnp.asarray(bh, jnp.float32)

    wx_ri = wx_t[:, :2 * H].astype(compute_dtype)    # [In, 2H]
    wh_ri = wh_t[:, :2 * H].astype(compute_dtype)    # [H,  2H]
    wx_n = wx_t[:, 2 * H:].astype(compute_dtype)     # [In, H]
    wh_n = wh_t[:, 2 * H:].astype(compute_dtype)     # [H,  H]

    b_ri = (bx[:2 * H] + bh[:2 * H]).reshape(1, 2 * H)   # f32, combined r,i bias
    b_xn = bx[2 * H:].reshape(1, H)                      # f32
    b_hn = bh[2 * H:].reshape(1, H)                      # f32
    return GRUParams(wx_ri, wh_ri, wx_n, wh_n, b_ri, b_xn, b_hn, compute_dtype)


def _pick_batch_tile(B, dtype):
    """Dtype-aware batch tile, preferring >=2 grid steps (v7x megacore)."""
    itemsize = jnp.dtype(dtype).itemsize
    if itemsize <= 1:
        min_tb = 32
    elif itemsize == 2:
        min_tb = 16
    else:
        min_tb = 8
    max_tb = 1024 if itemsize <= 2 else 512
    candidates = [t for t in (1024, 768, 512, 384, 256, 128, 64, 32, 16, 8)
                  if min_tb <= t <= max_tb]
    for tb in candidates:                 # largest tile leaving >= 2 grid steps
        if B % tb == 0 and B // tb >= 2:
            return tb
    for tb in candidates:                 # otherwise largest divisor
        if B % tb == 0:
            return tb
    return B                              # full-array block always layout-legal


def _vmem_limit_bytes(TB, In, H, compute_dtype, out_dtype, weight_buffers):
    """Explicit VMEM budget: resident weights + double-buffered x/h/out tiles."""
    isz = jnp.dtype(compute_dtype).itemsize
    osz = jnp.dtype(out_dtype).itemsize
    weights = (In * 2 * H + H * 2 * H + In * H + H * H) * isz * weight_buffers
    biases = 4 * H * 4 * 2
    tiles = 2 * TB * (In + H) * isz + 2 * TB * H * osz
    need = weights + biases + tiles + (4 << 20)      # slack for compiler temps
    try:
        cap = int(pltpu.get_tpu_info().vmem_capacity_bytes * 7 // 8)
    except Exception:
        cap = 56 << 20                               # safe on v5e/v6e/v7x
    return int(min(max(need, 16 << 20), cap))


def _make_call(B, In, H, TB, compute_dtype, out_dtype, weight_mode):
    grid = (pl.cdiv(B, TB),)
    kernel = functools.partial(gru_cell_kernel, hidden_size=H)
    weight_buffers = 1 if weight_mode is not None else 2

    def wspec(shape):
        # Constant-index (VMEM-resident across batch tiles) operands.
        if weight_mode is None:
            return pl.BlockSpec(shape, lambda b: (0, 0))
        return pl.BlockSpec(shape, lambda b: (0, 0), pipeline_mode=weight_mode)

    return pl.pallas_call(
        kernel,
        out_shape=jax.ShapeDtypeStruct((B, H), out_dtype),
        grid_spec=pltpu.PrefetchScalarGridSpec(
            num_scalar_prefetch=0,
            grid=grid,
            in_specs=[
                pl.BlockSpec((TB, In), lambda b: (b, 0)),   # x tile (pipelined)
                pl.BlockSpec((TB, H), lambda b: (b, 0)),    # h tile (pipelined)
                wspec((In, 2 * H)),                         # Wx_ri (resident)
                wspec((H, 2 * H)),                          # Wh_ri (resident)
                wspec((In, H)),                             # Wx_n  (resident)
                wspec((H, H)),                              # Wh_n  (resident)
                wspec((1, 2 * H)),                          # b_ri  (f32)
                wspec((1, H)),                              # bx_n  (f32)
                wspec((1, H)),                              # bh_n  (f32)
            ],
            out_specs=pl.BlockSpec((TB, H), lambda b: (b, 0)),
        ),
        compiler_params=pltpu.CompilerParams(
            dimension_semantics=("parallel",),
            vmem_limit_bytes=_vmem_limit_bytes(
                TB, In, H, compute_dtype, out_dtype, weight_buffers),
        ),
    )


def gru_cell(x, hidden, params):
    """Single GRU-cell step.  x: [B, In], hidden: [B, H] -> hy: [B, H]."""
    B, In = x.shape
    H = hidden.shape[1]
    out_dtype = hidden.dtype
    compute_dtype = params.compute_dtype
    TB = _pick_batch_tile(B, compute_dtype)

    xc = x.astype(compute_dtype)        # bf16-fed MXU; cast once in the wrapper
    hc = hidden.astype(compute_dtype)
    args = (xc, hc, params.wx_ri, params.wh_ri, params.wx_n, params.wh_n,
            params.b_ri, params.b_xn, params.b_hn)

    try:
        # Single-buffer the constant-index weights (halves their VMEM footprint;
        # matters under v7x's 64 MiB / v5e's 16 MiB-scoped-default budgets).
        return _make_call(B, In, H, TB, compute_dtype, out_dtype,
                          pl.Buffered(1))(*args)
    except Exception:
        # Fallback if this JAX build rejects buffer_count=1 pipeline_mode.
        return _make_call(B, In, H, TB, compute_dtype, out_dtype, None)(*args)


def gru_cell_reference(x, hidden, wx, bx, wh, bh):
    """Plain-JAX reference matching the PyTorch module exactly (f32)."""
    H = hidden.shape[1]
    gate_x = x @ wx.T + bx
    gate_h = hidden @ wh.T + bh
    i_r, i_i, i_n = gate_x[:, :H], gate_x[:, H:2 * H], gate_x[:, 2 * H:]
    h_r, h_i, h_n = gate_h[:, :H], gate_h[:, H:2 * H], gate_h[:, 2 * H:]
    resetgate = jax.nn.sigmoid(i_r + h_r)
    inputgate = jax.nn.sigmoid(i_i + h_i)
    newgate = jnp.tanh(i_n + resetgate * h_n)
    return newgate + inputgate * (hidden - newgate)


if __name__ == "__main__":
    B, IN, H = 32, 16, 32
    key = jax.random.PRNGKey(0)
    kx, kh, k1, k2, k3, k4 = jax.random.split(key, 6)

    # Deterministic parameter init mirroring reset_parameters():
    # uniform(-std, std) with std = 1/sqrt(hidden_size).
    std = 1.0 / math.sqrt(H)
    wx = jax.random.uniform(k1, (3 * H, IN), jnp.float32, -std, std)
    bx = jax.random.uniform(k2, (3 * H,), jnp.float32, -std, std)
    wh = jax.random.uniform(k3, (3 * H, H), jnp.float32, -std, std)
    bh = jax.random.uniform(k4, (3 * H,), jnp.float32, -std, std)

    x = jax.random.normal(kx, (B, IN), jnp.float32)
    hidden = jax.random.normal(kh, (B, H), jnp.float32)

    hy_ref = gru_cell_reference(x, hidden, wx, bx, wh, bh)

    # 1) Exactness check of the kernel algorithm with f32 MXU operands.
    packed_f32 = prepare_gru_params(wx, bx, wh, bh, compute_dtype=jnp.float32)
    hy_f32 = jax.block_until_ready(gru_cell(x, hidden, packed_f32))
    assert hy_f32.shape == (B, H)
    assert jnp.allclose(hy_f32, hy_ref, atol=1e-5, rtol=1e-5)

    # 2) Optimized path: bf16-fed MXU, f32 accumulation / gate math.
    packed_bf16 = prepare_gru_params(wx, bx, wh, bh, compute_dtype=jnp.bfloat16)
    hy_bf16 = jax.block_until_ready(gru_cell(x, hidden, packed_bf16))
    assert hy_bf16.shape == (B, H)
    assert jnp.allclose(hy_bf16, hy_ref, atol=5e-2, rtol=5e-2)  # bf16 rounding

    print("KERNEL_OK")
</pallas_src>

<mosaic_0001>
module attributes {stable_mosaic.version = 11 : i64} {
  func.func @gru_cell_kernel(%arg0: i32, %arg1: memref<16x16xf32, #tpu.memory_space<vmem>>, %arg2: memref<16x32xf32, #tpu.memory_space<vmem>>, %arg3: memref<16x64xf32, #tpu.memory_space<vmem>>, %arg4: memref<32x64xf32, #tpu.memory_space<vmem>>, %arg5: memref<16x32xf32, #tpu.memory_space<vmem>>, %arg6: memref<32x32xf32, #tpu.memory_space<vmem>>, %arg7: memref<1x64xf32, #tpu.memory_space<vmem>>, %arg8: memref<1x32xf32, #tpu.memory_space<vmem>>, %arg9: memref<1x32xf32, #tpu.memory_space<vmem>>, %arg10: memref<16x32xf32, #tpu.memory_space<vmem>>) attributes {dimension_semantics = [#tpu.dimension_semantics<parallel>], iteration_bounds = array<i64: 2>, scalar_prefetch = 0 : i64, scratch_operands = 0 : i64, tpu.core_type = #tpu.core_type<tc>, window_params = [{transform_indices = @transform_0, window_bounds = array<i64: 16, 16>}, {transform_indices = @transform_1, window_bounds = array<i64: 16, 32>}, {pipeline_mode = #tpu.pipeline_mode<synchronous>, transform_indices = @transform_2, window_bounds = array<i64: 16, 64>}, {pipeline_mode = #tpu.pipeline_mode<synchronous>, transform_indices = @transform_3, window_bounds = array<i64: 32, 64>}, {pipeline_mode = #tpu.pipeline_mode<synchronous>, transform_indices = @transform_4, window_bounds = array<i64: 16, 32>}, {pipeline_mode = #tpu.pipeline_mode<synchronous>, transform_indices = @transform_5, window_bounds = array<i64: 32, 32>}, {pipeline_mode = #tpu.pipeline_mode<synchronous>, transform_indices = @transform_6, window_bounds = array<i64: 1, 64>}, {pipeline_mode = #tpu.pipeline_mode<synchronous>, transform_indices = @transform_7, window_bounds = array<i64: 1, 32>}, {pipeline_mode = #tpu.pipeline_mode<synchronous>, transform_indices = @transform_8, window_bounds = array<i64: 1, 32>}, {transform_indices = @transform_9, window_bounds = array<i64: 16, 32>}]} {
    %c0 = arith.constant 0 : index
    %c0_0 = arith.constant 0 : index
    %0 = vector.load %arg1[%c0, %c0_0] : memref<16x16xf32, #tpu.memory_space<vmem>>, vector<16x16xf32>
    %c0_1 = arith.constant 0 : index
    %c0_2 = arith.constant 0 : index
    %1 = vector.load %arg2[%c0_1, %c0_2] : memref<16x32xf32, #tpu.memory_space<vmem>>, vector<16x32xf32>
    %c0_3 = arith.constant 0 : index
    %c0_4 = arith.constant 0 : index
    %2 = vector.load %arg3[%c0_3, %c0_4] : memref<16x64xf32, #tpu.memory_space<vmem>>, vector<16x64xf32>
    %cst = arith.constant dense<0.000000e+00> : vector<16x64xf32>
    %3 = tpu.matmul %0, %2, %cst {dimension_numbers = #tpu.dot_dimension_numbers<[1], [0], [0], [1], [0, 0, 1, 1], [], []>} : vector<16x16xf32>, vector<16x64xf32>, vector<16x64xf32> -> vector<16x64xf32>
    %c0_5 = arith.constant 0 : index
    %c0_6 = arith.constant 0 : index
    %4 = vector.load %arg4[%c0_5, %c0_6] : memref<32x64xf32, #tpu.memory_space<vmem>>, vector<32x64xf32>
    %cst_7 = arith.constant dense<0.000000e+00> : vector<16x64xf32>
    %5 = tpu.matmul %1, %4, %cst_7 {dimension_numbers = #tpu.dot_dimension_numbers<[1], [0], [0], [1], [0, 0, 1, 1], [], []>} : vector<16x32xf32>, vector<32x64xf32>, vector<16x64xf32> -> vector<16x64xf32>
    %6 = arith.addf %3, %5 : vector<16x64xf32>
    %c0_8 = arith.constant 0 : index
    %c0_9 = arith.constant 0 : index
    %7 = vector.load %arg7[%c0_8, %c0_9] : memref<1x64xf32, #tpu.memory_space<vmem>>, vector<1x64xf32>
    %8 = vector.broadcast %7 : vector<1x64xf32> to vector<16x64xf32>
    %9 = arith.addf %6, %8 : vector<16x64xf32>
    %10 = arith.negf %9 : vector<16x64xf32>
    %11 = math.exp %10 : vector<16x64xf32>
    %cst_10 = arith.constant 1.000000e+00 : f32
    %12 = vector.broadcast %cst_10 : f32 to vector<16x64xf32>
    %13 = arith.addf %12, %11 : vector<16x64xf32>
    %14 = arith.divf %12, %13 : vector<16x64xf32>
    %15 = vector.extract_strided_slice %14 {offsets = [0, 0], sizes = [16, 32], strides = [1, 1]} : vector<16x64xf32> to vector<16x32xf32>
    %16 = vector.extract_strided_slice %14 {offsets = [0, 32], sizes = [16, 32], strides = [1, 1]} : vector<16x64xf32> to vector<16x32xf32>
    %c0_11 = arith.constant 0 : index
    %c0_12 = arith.constant 0 : index
    %17 = vector.load %arg5[%c0_11, %c0_12] : memref<16x32xf32, #tpu.memory_space<vmem>>, vector<16x32xf32>
    %cst_13 = arith.constant dense<0.000000e+00> : vector<16x32xf32>
    %18 = tpu.matmul %0, %17, %cst_13 {dimension_numbers = #tpu.dot_dimension_numbers<[1], [0], [0], [1], [0, 0, 1, 1], [], []>} : vector<16x16xf32>, vector<16x32xf32>, vector<16x32xf32> -> vector<16x32xf32>
    %c0_14 = arith.constant 0 : index
    %c0_15 = arith.constant 0 : index
    %19 = vector.load %arg6[%c0_14, %c0_15] : memref<32x32xf32, #tpu.memory_space<vmem>>, vector<32x32xf32>
    %cst_16 = arith.constant dense<0.000000e+00> : vector<16x32xf32>
    %20 = tpu.matmul %1, %19, %cst_16 {dimension_numbers = #tpu.dot_dimension_numbers<[1], [0], [0], [1], [0, 0, 1, 1], [], []>} : vector<16x32xf32>, vector<32x32xf32>, vector<16x32xf32> -> vector<16x32xf32>
    %c0_17 = arith.constant 0 : index
    %c0_18 = arith.constant 0 : index
    %21 = vector.load %arg8[%c0_17, %c0_18] : memref<1x32xf32, #tpu.memory_space<vmem>>, vector<1x32xf32>
    %22 = vector.broadcast %21 : vector<1x32xf32> to vector<16x32xf32>
    %23 = arith.addf %18, %22 : vector<16x32xf32>
    %c0_19 = arith.constant 0 : index
    %c0_20 = arith.constant 0 : index
    %24 = vector.load %arg9[%c0_19, %c0_20] : memref<1x32xf32, #tpu.memory_space<vmem>>, vector<1x32xf32>
    %25 = vector.broadcast %24 : vector<1x32xf32> to vector<16x32xf32>
    %26 = arith.addf %20, %25 : vector<16x32xf32>
    %27 = arith.mulf %15, %26 : vector<16x32xf32>
    %28 = arith.addf %23, %27 : vector<16x32xf32>
    %29 = math.tanh %28 : vector<16x32xf32>
    %30 = arith.subf %1, %29 : vector<16x32xf32>
    %31 = arith.mulf %16, %30 : vector<16x32xf32>
    %32 = arith.addf %29, %31 : vector<16x32xf32>
    %c0_21 = arith.constant 0 : index
    %c0_22 = arith.constant 0 : index
    %33 = vector.load %arg10[%c0_21, %c0_22] : memref<16x32xf32, #tpu.memory_space<vmem>>, vector<16x32xf32>
    tpu.vector_store %arg10[%c0_21, %c0_22], %32 {strides = array<i32>} : memref<16x32xf32, #tpu.memory_space<vmem>>, vector<16x32xf32>,
    return
  }
  func.func @transform_0(%arg0: i32) -> (i32, i32) {
    %c0_i32 = arith.constant 0 : i32
    %c0_i32_0 = arith.constant 0 : i32
    return %arg0, %c0_i32 : i32, i32
  }
  func.func @transform_1(%arg0: i32) -> (i32, i32) {
    %c0_i32 = arith.constant 0 : i32
    %c0_i32_0 = arith.constant 0 : i32
    return %arg0, %c0_i32 : i32, i32
  }
  func.func @transform_2(%arg0: i32) -> (i32, i32) {
    %c0_i32 = arith.constant 0 : i32
    %c0_i32_0 = arith.constant 0 : i32
    %c0_i32_1 = arith.constant 0 : i32
    return %c0_i32, %c0_i32_0 : i32, i32
  }
  func.func @transform_3(%arg0: i32) -> (i32, i32) {
    %c0_i32 = arith.constant 0 : i32
    %c0_i32_0 = arith.constant 0 : i32
    %c0_i32_1 = arith.constant 0 : i32
    return %c0_i32, %c0_i32_0 : i32, i32
  }
  func.func @transform_4(%arg0: i32) -> (i32, i32) {
    %c0_i32 = arith.constant 0 : i32
    %c0_i32_0 = arith.constant 0 : i32
    %c0_i32_1 = arith.constant 0 : i32
    return %c0_i32, %c0_i32_0 : i32, i32
  }
  func.func @transform_5(%arg0: i32) -> (i32, i32) {
    %c0_i32 = arith.constant 0 : i32
    %c0_i32_0 = arith.constant 0 : i32
    %c0_i32_1 = arith.constant 0 : i32
    return %c0_i32, %c0_i32_0 : i32, i32
  }
  func.func @transform_6(%arg0: i32) -> (i32, i32) {
    %c0_i32 = arith.constant 0 : i32
    %c0_i32_0 = arith.constant 0 : i32
    %c0_i32_1 = arith.constant 0 : i32
    return %c0_i32, %c0_i32_0 : i32, i32
  }
  func.func @transform_7(%arg0: i32) -> (i32, i32) {
    %c0_i32 = arith.constant 0 : i32
    %c0_i32_0 = arith.constant 0 : i32
    %c0_i32_1 = arith.constant 0 : i32
    return %c0_i32, %c0_i32_0 : i32, i32
  }
  func.func @transform_8(%arg0: i32) -> (i32, i32) {
    %c0_i32 = arith.constant 0 : i32
    %c0_i32_0 = arith.constant 0 : i32
    %c0_i32_1 = arith.constant 0 : i32
    return %c0_i32, %c0_i32_0 : i32, i32
  }
  func.func @transform_9(%arg0: i32) -> (i32, i32) {
    %c0_i32 = arith.constant 0 : i32
    %c0_i32_0 = arith.constant 0 : i32
    return %arg0, %c0_i32 : i32, i32
  }
}

module attributes {stable_mosaic.version = 11 : i64} {
  func.func @gru_cell_kernel(%arg0: i32, %arg1: memref<16x16xf32, #tpu.memory_space<vmem>>, %arg2: memref<16x32xf32, #tpu.memory_space<vmem>>, %arg3: memref<16x64xf32, #tpu.memory_space<vmem>>, %arg4: memref<32x64xf32, #tpu.memory_space<vmem>>, %arg5: memref<16x32xf32, #tpu.memory_space<vmem>>, %arg6: memref<32x32xf32, #tpu.memory_space<vmem>>, %arg7: memref<1x64xf32, #tpu.memory_space<vmem>>, %arg8: memref<1x32xf32, #tpu.memory_space<vmem>>, %arg9: memref<1x32xf32, #tpu.memory_space<vmem>>, %arg10: memref<16x32xf32, #tpu.memory_space<vmem>>) attributes {dimension_semantics = [#tpu.dimension_semantics<parallel>], iteration_bounds = array<i64: 2>, scalar_prefetch = 0 : i64, scratch_operands = 0 : i64, tpu.core_type = #tpu.core_type<tc>, window_params = [{transform_indices = @transform_0, window_bounds = array<i64: 16, 16>}, {transform_indices = @transform_1, window_bounds = array<i64: 16, 32>}, {pipeline_mode = #tpu.pipeline_mode<synchronous>, transform_indices = @transform_2, window_bounds = array<i64: 16, 64>}, {pipeline_mode = #tpu.pipeline_mode<synchronous>, transform_indices = @transform_3, window_bounds = array<i64: 32, 64>}, {pipeline_mode = #tpu.pipeline_mode<synchronous>, transform_indices = @transform_4, window_bounds = array<i64: 16, 32>}, {pipeline_mode = #tpu.pipeline_mode<synchronous>, transform_indices = @transform_5, window_bounds = array<i64: 32, 32>}, {pipeline_mode = #tpu.pipeline_mode<synchronous>, transform_indices = @transform_6, window_bounds = array<i64: 1, 64>}, {pipeline_mode = #tpu.pipeline_mode<synchronous>, transform_indices = @transform_7, window_bounds = array<i64: 1, 32>}, {pipeline_mode = #tpu.pipeline_mode<synchronous>, transform_indices = @transform_8, window_bounds = array<i64: 1, 32>}, {transform_indices = @transform_9, window_bounds = array<i64: 16, 32>}]} {
    %c0 = arith.constant 0 : index
    %c0_0 = arith.constant 0 : index
    %0 = vector.load %arg1[%c0, %c0_0] : memref<16x16xf32, #tpu.memory_space<vmem>>, vector<16x16xf32>
    %c0_1 = arith.constant 0 : index
    %c0_2 = arith.constant 0 : index
    %1 = vector.load %arg2[%c0_1, %c0_2] : memref<16x32xf32, #tpu.memory_space<vmem>>, vector<16x32xf32>
    %c0_3 = arith.constant 0 : index
    %c0_4 = arith.constant 0 : index
    %2 = vector.load %arg3[%c0_3, %c0_4] : memref<16x64xf32, #tpu.memory_space<vmem>>, vector<16x64xf32>
    %cst = arith.constant dense<0.000000e+00> : vector<16x64xf32>
    %3 = tpu.matmul %0, %2, %cst {dimension_numbers = #tpu.dot_dimension_numbers<[1], [0], [0], [1], [0, 0, 1, 1], [], []>} : vector<16x16xf32>, vector<16x64xf32>, vector<16x64xf32> -> vector<16x64xf32>
    %c0_5 = arith.constant 0 : index
    %c0_6 = arith.constant 0 : index
    %4 = vector.load %arg4[%c0_5, %c0_6] : memref<32x64xf32, #tpu.memory_space<vmem>>, vector<32x64xf32>
    %cst_7 = arith.constant dense<0.000000e+00> : vector<16x64xf32>
    %5 = tpu.matmul %1, %4, %cst_7 {dimension_numbers = #tpu.dot_dimension_numbers<[1], [0], [0], [1], [0, 0, 1, 1], [], []>} : vector<16x32xf32>, vector<32x64xf32>, vector<16x64xf32> -> vector<16x64xf32>
    %6 = arith.addf %3, %5 : vector<16x64xf32>
    %c0_8 = arith.constant 0 : index
    %c0_9 = arith.constant 0 : index
    %7 = vector.load %arg7[%c0_8, %c0_9] : memref<1x64xf32, #tpu.memory_space<vmem>>, vector<1x64xf32>
    %8 = vector.broadcast %7 : vector<1x64xf32> to vector<16x64xf32>
    %9 = arith.addf %6, %8 : vector<16x64xf32>
    %10 = arith.negf %9 : vector<16x64xf32>
    %11 = math.exp %10 : vector<16x64xf32>
    %cst_10 = arith.constant 1.000000e+00 : f32
    %12 = vector.broadcast %cst_10 : f32 to vector<16x64xf32>
    %13 = arith.addf %12, %11 : vector<16x64xf32>
    %14 = arith.divf %12, %13 : vector<16x64xf32>
    %15 = vector.extract_strided_slice %14 {offsets = [0, 0], sizes = [16, 32], strides = [1, 1]} : vector<16x64xf32> to vector<16x32xf32>
    %16 = vector.extract_strided_slice %14 {offsets = [0, 32], sizes = [16, 32], strides = [1, 1]} : vector<16x64xf32> to vector<16x32xf32>
    %c0_11 = arith.constant 0 : index
    %c0_12 = arith.constant 0 : index
    %17 = vector.load %arg5[%c0_11, %c0_12] : memref<16x32xf32, #tpu.memory_space<vmem>>, vector<16x32xf32>
    %cst_13 = arith.constant dense<0.000000e+00> : vector<16x32xf32>
    %18 = tpu.matmul %0, %17, %cst_13 {dimension_numbers = #tpu.dot_dimension_numbers<[1], [0], [0], [1], [0, 0, 1, 1], [], []>} : vector<16x16xf32>, vector<16x32xf32>, vector<16x32xf32> -> vector<16x32xf32>
    %c0_14 = arith.constant 0 : index
    %c0_15 = arith.constant 0 : index
    %19 = vector.load %arg6[%c0_14, %c0_15] : memref<32x32xf32, #tpu.memory_space<vmem>>, vector<32x32xf32>
    %cst_16 = arith.constant dense<0.000000e+00> : vector<16x32xf32>
    %20 = tpu.matmul %1, %19, %cst_16 {dimension_numbers = #tpu.dot_dimension_numbers<[1], [0], [0], [1], [0, 0, 1, 1], [], []>} : vector<16x32xf32>, vector<32x32xf32>, vector<16x32xf32> -> vector<16x32xf32>
    %c0_17 = arith.constant 0 : index
    %c0_18 = arith.constant 0 : index
    %21 = vector.load %arg8[%c0_17, %c0_18] : memref<1x32xf32, #tpu.memory_space<vmem>>, vector<1x32xf32>
    %22 = vector.broadcast %21 : vector<1x32xf32> to vector<16x32xf32>
    %23 = arith.addf %18, %22 : vector<16x32xf32>
    %c0_19 = arith.constant 0 : index
    %c0_20 = arith.constant 0 : index
    %24 = vector.load %arg9[%c0_19, %c0_20] : memref<1x32xf32, #tpu.memory_space<vmem>>, vector<1x32xf32>
    %25 = vector.broadcast %24 : vector<1x32xf32> to vector<16x32xf32>
    %26 = arith.addf %20, %25 : vector<16x32xf32>
    %27 = arith.mulf %15, %26 : vector<16x32xf32>
    %28 = arith.addf %23, %27 : vector<16x32xf32>
    %29 = math.tanh %28 : vector<16x32xf32>
    %30 = arith.subf %1, %29 : vector<16x32xf32>
    %31 = arith.mulf %16, %30 : vector<16x32xf32>
    %32 = arith.addf %29, %31 : vector<16x32xf32>
    %c0_21 = arith.constant 0 : index
    %c0_22 = arith.constant 0 : index
    %33 = vector.load %arg10[%c0_21, %c0_22] : memref<16x32xf32, #tpu.memory_space<vmem>>, vector<16x32xf32>
    tpu.vector_store %arg10[%c0_21, %c0_22], %32 {strides = array<i32>} : memref<16x32xf32, #tpu.memory_space<vmem>>, vector<16x32xf32>,
    return
  }
  func.func @transform_0(%arg0: i32) -> (i32, i32) {
    %c0_i32 = arith.constant 0 : i32
    %c0_i32_0 = arith.constant 0 : i32
    return %arg0, %c0_i32 : i32, i32
  }
  func.func @transform_1(%arg0: i32) -> (i32, i32) {
    %c0_i32 = arith.constant 0 : i32
    %c0_i32_0 = arith.constant 0 : i32
    return %arg0, %c0_i32 : i32, i32
  }
  func.func @transform_2(%arg0: i32) -> (i32, i32) {
    %c0_i32 = arith.constant 0 : i32
    %c0_i32_0 = arith.constant 0 : i32
    %c0_i32_1 = arith.constant 0 : i32
    return %c0_i32, %c0_i32_0 : i32, i32
  }
  func.func @transform_3(%arg0: i32) -> (i32, i32) {
    %c0_i32 = arith.constant 0 : i32
    %c0_i32_0 = arith.constant 0 : i32
    %c0_i32_1 = arith.constant 0 : i32
    return %c0_i32, %c0_i32_0 : i32, i32
  }
  func.func @transform_4(%arg0: i32) -> (i32, i32) {
    %c0_i32 = arith.constant 0 : i32
    %c0_i32_0 = arith.constant 0 : i32
    %c0_i32_1 = arith.constant 0 : i32
    return %c0_i32, %c0_i32_0 : i32, i32
  }
  func.func @transform_5(%arg0: i32) -> (i32, i32) {
    %c0_i32 = arith.constant 0 : i32
    %c0_i32_0 = arith.constant 0 : i32
    %c0_i32_1 = arith.constant 0 : i32
    return %c0_i32, %c0_i32_0 : i32, i32
  }
  func.func @transform_6(%arg0: i32) -> (i32, i32) {
    %c0_i32 = arith.constant 0 : i32
    %c0_i32_0 = arith.constant 0 : i32
    %c0_i32_1 = arith.constant 0 : i32
    return %c0_i32, %c0_i32_0 : i32, i32
  }
  func.func @transform_7(%arg0: i32) -> (i32, i32) {
    %c0_i32 = arith.constant 0 : i32
    %c0_i32_0 = arith.constant 0 : i32
    %c0_i32_1 = arith.constant 0 : i32
    return %c0_i32, %c0_i32_0 : i32, i32
  }
  func.func @transform_8(%arg0: i32) -> (i32, i32) {
    %c0_i32 = arith.constant 0 : i32
    %c0_i32_0 = arith.constant 0 : i32
    %c0_i32_1 = arith.constant 0 : i32
    return %c0_i32, %c0_i32_0 : i32, i32
  }
  func.func @transform_9(%arg0: i32) -> (i32, i32) {
    %c0_i32 = arith.constant 0 : i32
    %c0_i32_0 = arith.constant 0 : i32
    return %arg0, %c0_i32 : i32, i32
  }
}

</mosaic_0001>

<llo_original>
// kernel: tpu_custom_call.1
$region0: #{tpu_custom_call.1}
  #allocation0 [shape = 'u32[]', space=smem, size = 0x4, offset = 0x4, fixed_abs, tag = 'smem constant byte address 0x4 - core index']
  #allocation1 [shape = 'u32[144,128]{1,0:T(1,128)}', space=vmem, size = 0x12000, scoped, tag = 'internal scratch']
  %s0 = inlined_call_operand.vmem [shape: f32[32,16], index: 0, kind: input, shape index: {}]
  %s1 = inlined_call_operand.vmem [shape: f32[32,32], index: 1, kind: input, shape index: {}]
  %s2 = inlined_call_operand.hbm [shape: f32[16,64], index: 2, kind: input, shape index: {}]
  %s3 = inlined_call_operand.hbm [shape: f32[32,64], index: 3, kind: input, shape index: {}]
  %s4 = inlined_call_operand.hbm [shape: f32[16,32], index: 4, kind: input, shape index: {}]
  %s5 = inlined_call_operand.vmem [shape: f32[32,32], index: 5, kind: input, shape index: {}]
  %s6 = inlined_call_operand.vmem [shape: f32[1,64], index: 6, kind: input, shape index: {}]
  %s7 = inlined_call_operand.vmem [shape: f32[1,32], index: 7, kind: input, shape index: {}]
  %s8 = inlined_call_operand.vmem [shape: f32[1,32], index: 8, kind: input, shape index: {}]
  %s9 = inlined_call_operand.hbm [shape: f32[32,32], index: 9, kind: output, shape index: {}]
  %s10 = sld [smem:[#allocation0]]
  $region81: #{tpu_custom_call.1} parent=0
    _
  %s12 = ssub.s32 1, %s10
  %s13 = scalar_select 0, %s12, %s10
  $region1: #{tpu_custom_call.1} parent=0
    #allocation2 [shape = 'u8[8192]{0}', space=vmem, size = 0x2000, scoped, tag = 'input window, operand 2, single buffered']
    #allocation3 [shape = 's32[2]{0}', space=sflag, size = 0x8, scoped, tag = 'scoped memory for tpu_custom_call.1']
    #allocation4 [shape = 's32[2]{0}', space=sflag, size = 0x8, scoped, tag = 'scoped memory for tpu_custom_call.1']
    #allocation5 [shape = 'u8[16384]{0}', space=vmem, size = 0x4000, scoped, tag = 'input window, operand 3, single buffered']
    #allocation6 [shape = 's32[1]{0}', space=sflag, size = 0x4, scoped, tag = 'scoped memory for tpu_custom_call.1']
    #allocation7 [shape = 'u8[8192]{0}', space=vmem, size = 0x2000, scoped, tag = 'input window, operand 4, single buffered']
    #allocation8 [shape = 'u8[16384]{0}', space=vmem, size = 0x4000, scoped, tag = 'output window, operand 0']
    %14 = vsyncpa [#allocation3], 0
    %15 = vsyncpa [#allocation6], 0
    %16 = vsyncpa [#allocation4], 0
    %s17 = scalar_lea.sflag [#allocation4], 1
    %18 = vsyncpa %s17, 0
    loop: start=0, step=1, limit=4
    $region2: #{tpu_custom_call.1} parent=1 // loop_pre_header
      _
    $region3: #{tpu_custom_call.1} parent=1 // loop_header
      %s20 = sphi 0, %s24
      %p21 = scmp.ge.s32.totalorder %s20, 4
      %s30 = sphi 0, %s32
      %s33 = sphi 0, %s30
      %s34 = sphi 0, %s33
      %s50 = sphi 0, %s34
      %s56 = sphi 0, %s58
      %s59 = sphi 0, %s56
      %s60 = sphi 0, %s59
      %s76 = sphi 0, %s60
      %s80 = sphi 0, %s80
      %s82 = sphi 0, %s80
      %s83 = sphi 0, %s82
      %s97 = sphi 0, %s83
      %s101 = sphi 0, %s101
      %s103 = sphi 0, %s101
      %s104 = sphi 0, %s103
      %s118 = sphi 0, %s104
      %s122 = sphi 0, %s122
      %s124 = sphi 0, %s122
      %s125 = sphi 0, %s124
      %s139 = sphi 0, %s125
      %s143 = sphi 0, %s143
      %s145 = sphi 0, %s143
      %s146 = sphi 0, %s145
      %s160 = sphi 0, %s146
      %s164 = sphi 0, %s164
      %s166 = sphi 0, %s164
      %s167 = sphi 0, %s166
      %s181 = sphi 0, %s167
      %s185 = sphi 0, %s185
      %s187 = sphi 0, %s185
      %s188 = sphi 0, %s187
      %s202 = sphi 0, %s188
      %s206 = sphi 0, %s206
      %s208 = sphi 0, %s206
      %s209 = sphi 0, %s208
      %s223 = sphi 0, %s209
      %s229 = sphi 0, %s231
      %s232 = sphi 0, %s229
      %s233 = sphi 0, %s232
      %s249 = sphi 0, %s233
    $region4: #{tpu_custom_call.1} parent=1 // loop_header_branch
      %23 = sbr.rel (%p21) target = $region8
    $region5: #{tpu_custom_call.1} parent=1 // loop_body
      %s25 = ssub.s32 %s20, 1
      %s26 = ssub.s32 %s20, 2
      %s27 = sadd.s32 %s20, 1
      %s28 = ssub.s32 %s20, %s27
      %p29 = scmp.eq.s32.totalorder %s28, 0
      %s31 = sadd.s32 %s30, 1
      %s32 = scalar_select %p29, %s30, %s31
      %p35 = pneg %p29
      %p36 = scmp.eq.s32.totalorder %s20, 1
      %p37 = por %p35, %p36
      %p38 = scmp.ne.s32.totalorder %s30, %s33
      %p39 = scmp.eq.s32.totalorder %s20, 0
      %p40 = por %p38, %p39
      %p41 = scmp.ne.s32.totalorder %s30, %s33
      %p42 = scmp.eq.s32.totalorder %s25, 1
      %p43 = por %p41, %p42
      %p44 = scmp.ne.s32.totalorder %s33, %s34
      %p45 = scmp.eq.s32.totalorder %s25, 0
      %p46 = por %p44, %p45
      %p47 = scmp.ne.s32.totalorder %s33, %s34
      %p48 = scmp.eq.s32.totalorder %s26, 1
      %p49 = por %p47, %p48
      %p51 = scmp.ne.s32.totalorder %s34, %s50
      %p52 = scmp.eq.s32.totalorder %s26, 0
      %p53 = por %p51, %p52
      %s54 = ssub.s32 %s20, %s27
      %p55 = scmp.eq.s32.totalorder %s54, 0
      %s57 = sadd.s32 %s56, 1
      %s58 = scalar_select %p55, %s56, %s57
      %p61 = pneg %p55
      %p62 = scmp.eq.s32.totalorder %s20, 1
      %p63 = por %p61, %p62
      %p64 = scmp.ne.s32.totalorder %s56, %s59
      %p65 = scmp.eq.s32.totalorder %s20, 0
      %p66 = por %p64, %p65
      %p67 = scmp.ne.s32.totalorder %s56, %s59
      %p68 = scmp.eq.s32.totalorder %s25, 1
      %p69 = por %p67, %p68
      %p70 = scmp.ne.s32.totalorder %s59, %s60
      %p71 = scmp.eq.s32.totalorder %s25, 0
      %p72 = por %p70, %p71
      %p73 = scmp.ne.s32.totalorder %s59, %s60
      %p74 = scmp.eq.s32.totalorder %s26, 1
      %p75 = por %p73, %p74
      %p77 = scmp.ne.s32.totalorder %s60, %s76
      %p78 = scmp.eq.s32.totalorder %s26, 0
      %p79 = por %p77, %p78
      %s81 = sadd.s32 %s80, 1
      %p84 = scmp.eq.s32.totalorder %s20, 1
      %p85 = scmp.ne.s32.totalorder %s80, %s82
      %p86 = scmp.eq.s32.totalorder %s20, 0
      %p87 = por %p85, %p86
      %p88 = scmp.ne.s32.totalorder %s80, %s82
      %p89 = scmp.eq.s32.totalorder %s25, 1
      %p90 = por %p88, %p89
      %p91 = scmp.ne.s32.totalorder %s82, %s83
      %p92 = scmp.eq.s32.totalorder %s25, 0
      %p93 = por %p91, %p92
      %p94 = scmp.ne.s32.totalorder %s82, %s83
      %p95 = scmp.eq.s32.totalorder %s26, 1
      %p96 = por %p94, %p95
      %p98 = scmp.ne.s32.totalorder %s83, %s97
      %p99 = scmp.eq.s32.totalorder %s26, 0
      %p100 = por %p98, %p99
      %s102 = sadd.s32 %s101, 1
      %p105 = scmp.eq.s32.totalorder %s20, 1
      %p106 = scmp.ne.s32.totalorder %s101, %s103
      %p107 = scmp.eq.s32.totalorder %s20, 0
      %p108 = por %p106, %p107
      %p109 = scmp.ne.s32.totalorder %s101, %s103
      %p110 = scmp.eq.s32.totalorder %s25, 1
      %p111 = por %p109, %p110
      %p112 = scmp.ne.s32.totalorder %s103, %s104
      %p113 = scmp.eq.s32.totalorder %s25, 0
      %p114 = por %p112, %p113
      %p115 = scmp.ne.s32.totalorder %s103, %s104
      %p116 = scmp.eq.s32.totalorder %s26, 1
      %p117 = por %p115, %p116
      %p119 = scmp.ne.s32.totalorder %s104, %s118
      %p120 = scmp.eq.s32.totalorder %s26, 0
      %p121 = por %p119, %p120
      %s123 = sadd.s32 %s122, 1
      %p126 = scmp.eq.s32.totalorder %s20, 1
      %p127 = scmp.ne.s32.totalorder %s122, %s124
      %p128 = scmp.eq.s32.totalorder %s20, 0
      %p129 = por %p127, %p128
      %p130 = scmp.ne.s32.totalorder %s122, %s124
      %p131 = scmp.eq.s32.totalorder %s25, 1
      %p132 = por %p130, %p131
      %p133 = scmp.ne.s32.totalorder %s124, %s125
      %p134 = scmp.eq.s32.totalorder %s25, 0
      %p135 = por %p133, %p134
      %p136 = scmp.ne.s32.totalorder %s124, %s125
      %p137 = scmp.eq.s32.totalorder %s26, 1
      %p138 = por %p136, %p137
      %p140 = scmp.ne.s32.totalorder %s125, %s139
      %p141 = scmp.eq.s32.totalorder %s26, 0
      %p142 = por %p140, %p141
      %s144 = sadd.s32 %s143, 1
      %p147 = scmp.eq.s32.totalorder %s20, 1
      %p148 = scmp.ne.s32.totalorder %s143, %s145
      %p149 = scmp.eq.s32.totalorder %s20, 0
      %p150 = por %p148, %p149
      %p151 = scmp.ne.s32.totalorder %s143, %s145
      %p152 = scmp.eq.s32.totalorder %s25, 1
      %p153 = por %p151, %p152
      %p154 = scmp.ne.s32.totalorder %s145, %s146
      %p155 = scmp.eq.s32.totalorder %s25, 0
      %p156 = por %p154, %p155
      %p157 = scmp.ne.s32.totalorder %s145, %s146
      %p158 = scmp.eq.s32.totalorder %s26, 1
      %p159 = por %p157, %p158
      %p161 = scmp.ne.s32.totalorder %s146, %s160
      %p162 = scmp.eq.s32.totalorder %s26, 0
      %p163 = por %p161, %p162
      %s165 = sadd.s32 %s164, 1
      %p168 = scmp.eq.s32.totalorder %s20, 1
      %p169 = scmp.ne.s32.totalorder %s164, %s166
      %p170 = scmp.eq.s32.totalorder %s20, 0
      %p171 = por %p169, %p170
      %p172 = scmp.ne.s32.totalorder %s164, %s166
      %p173 = scmp.eq.s32.totalorder %s25, 1
      %p174 = por %p172, %p173
      %p175 = scmp.ne.s32.totalorder %s166, %s167
      %p176 = scmp.eq.s32.totalorder %s25, 0
      %p177 = por %p175, %p176
      %p178 = scmp.ne.s32.totalorder %s166, %s167
      %p179 = scmp.eq.s32.totalorder %s26, 1
      %p180 = por %p178, %p179
      %p182 = scmp.ne.s32.totalorder %s167, %s181
      %p183 = scmp.eq.s32.totalorder %s26, 0
      %p184 = por %p182, %p183
      %s186 = sadd.s32 %s185, 1
      %p189 = scmp.eq.s32.totalorder %s20, 1
      %p190 = scmp.ne.s32.totalorder %s185, %s187
      %p191 = scmp.eq.s32.totalorder %s20, 0
      %p192 = por %p190, %p191
      %p193 = scmp.ne.s32.totalorder %s185, %s187
      %p194 = scmp.eq.s32.totalorder %s25, 1
      %p195 = por %p193, %p194
      %p196 = scmp.ne.s32.totalorder %s187, %s188
      %p197 = scmp.eq.s32.totalorder %s25, 0
      %p198 = por %p196, %p197
      %p199 = scmp.ne.s32.totalorder %s187, %s188
      %p200 = scmp.eq.s32.totalorder %s26, 1
      %p201 = por %p199, %p200
      %p203 = scmp.ne.s32.totalorder %s188, %s202
      %p204 = scmp.eq.s32.totalorder %s26, 0
      %p205 = por %p203, %p204
      %s207 = sadd.s32 %s206, 1
      %p210 = scmp.eq.s32.totalorder %s20, 1
      %p211 = scmp.ne.s32.totalorder %s206, %s208
      %p212 = scmp.eq.s32.totalorder %s20, 0
      %p213 = por %p211, %p212
      %p214 = scmp.ne.s32.totalorder %s206, %s208
      %p215 = scmp.eq.s32.totalorder %s25, 1
      %p216 = por %p214, %p215
      %p217 = scmp.ne.s32.totalorder %s208, %s209
      %p218 = scmp.eq.s32.totalorder %s25, 0
      %p219 = por %p217, %p218
      %p220 = scmp.ne.s32.totalorder %s208, %s209
      %p221 = scmp.eq.s32.totalorder %s26, 1
      %p222 = por %p220, %p221
      %p224 = scmp.ne.s32.totalorder %s209, %s223
      %p225 = scmp.eq.s32.totalorder %s26, 0
      %p226 = por %p224, %p225
      %s227 = ssub.s32 %s20, %s27
      %p228 = scmp.eq.s32.totalorder %s227, 0
      %s230 = sadd.s32 %s229, 1
      %s231 = scalar_select %p228, %s229, %s230
      %p234 = pneg %p228
      %p235 = scmp.eq.s32.totalorder %s20, 1
      %p236 = por %p234, %p235
      %p237 = scmp.ne.s32.totalorder %s229, %s232
      %p238 = scmp.eq.s32.totalorder %s20, 0
      %p239 = por %p237, %p238
      %p240 = scmp.ne.s32.totalorder %s229, %s232
      %p241 = scmp.eq.s32.totalorder %s25, 1
      %p242 = por %p240, %p241
      %p243 = scmp.ne.s32.totalorder %s232, %s233
      %p244 = scmp.eq.s32.totalorder %s25, 0
      %p245 = por %p243, %p244
      %p246 = scmp.ne.s32.totalorder %s232, %s233
      %p247 = scmp.eq.s32.totalorder %s26, 1
      %p248 = por %p246, %p247
      %p250 = scmp.ne.s32.totalorder %s233, %s249
      %p251 = scmp.eq.s32.totalorder %s26, 0
      %p252 = por %p250, %p251
      %p253 = scmp.le.s32.totalorder 1, %s20
      %p254 = scmp.lt.s32.totalorder %s20, 3
      %p255 = pnand %p253, %p254
      %p256 = pneg %p255
      // Predicated region
      $region9: #{tpu_custom_call.1} parent=5 // pred_check
        _
      $region10: #{tpu_custom_call.1} parent=5 // pred_check_branch
        %258 = sbr.rel (%p255) target = $region12
      $region11: #{tpu_custom_call.1} parent=5 // pred_region
        %s259 = ssub.s32 %s20, 1
        // Predicated region
        $region13: #{tpu_custom_call.1} parent=11 // pred_check
          %p260 = pneg %p93
        $region14: #{tpu_custom_call.1} parent=11 // pred_check_branch
          %262 = sbr.rel (%p260) target = $region16
        $region15: #{tpu_custom_call.1} parent=11 // pred_region
          %s264 = ssub.s32 256, 256
          %265 = vsyncadd [#allocation3], %s264
          %s266 = sshll.u32 [#allocation2], 4
          %s267 = int_to_ptr.vmem [resolvable:$true] %s266
          %272 = dma.hbm_to_vmem [thread:$0]  %s2, 256, %s267, [#allocation3], 128, 128, 8
        $region16: #{tpu_custom_call.1} parent=11 // pred_fallthru
          _
        // Predicated region
        $region17: #{tpu_custom_call.1} parent=11 // pred_check
          %p273 = pneg %p114
        $region18: #{tpu_custom_call.1} parent=11 // pred_check_branch
          %275 = sbr.rel (%p273) target = $region20
        $region19: #{tpu_custom_call.1} parent=11 // pred_region
          %s277 = ssub.s32 512, 512
          %278 = vsyncadd [#allocation6], %s277
          %s279 = sshll.u32 [#allocation5], 4
          %s280 = int_to_ptr.vmem [resolvable:$true] %s279
          %285 = dma.hbm_to_vmem [thread:$0]  %s3, 512, %s280, [#allocation6], 128, 128, 8
        $region20: #{tpu_custom_call.1} parent=11 // pred_fallthru
          _
        // Predicated region
        $region21: #{tpu_custom_call.1} parent=11 // pred_check
          %p286 = pneg %p135
        $region22: #{tpu_custom_call.1} parent=11 // pred_check_branch
          %288 = sbr.rel (%p286) target = $region24
        $region23: #{tpu_custom_call.1} parent=11 // pred_region
          %s290 = ssub.s32 256, 256
          %291 = vsyncadd [#allocation6], %s290
          %s292 = sshll.u32 [#allocation7], 4
          %s293 = int_to_ptr.vmem [resolvable:$true] %s292
          %298 = dma.hbm_to_vmem [thread:$0]  %s4, 256, %s293, [#allocation6], 128, 128, 8
        $region24: #{tpu_custom_call.1} parent=11 // pred_fallthru
          _
        // Predicated region
        $region25: #{tpu_custom_call.1} parent=11 // pred_check
          %p299 = pneg %p156
        $region26: #{tpu_custom_call.1} parent=11 // pred_check_branch
          %301 = sbr.rel (%p299) target = $region28
        $region27: #{tpu_custom_call.1} parent=11 // pred_region
          _
        $region28: #{tpu_custom_call.1} parent=11 // pred_fallthru
          _
        // Predicated region
        $region29: #{tpu_custom_call.1} parent=11 // pred_check
          %p302 = pneg %p177
        $region30: #{tpu_custom_call.1} parent=11 // pred_check_branch
          %304 = sbr.rel (%p302) target = $region32
        $region31: #{tpu_custom_call.1} parent=11 // pred_region
          _
        $region32: #{tpu_custom_call.1} parent=11 // pred_fallthru
          _
        // Predicated region
        $region33: #{tpu_custom_call.1} parent=11 // pred_check
          %p305 = pneg %p198
        $region34: #{tpu_custom_call.1} parent=11 // pred_check_branch
          %307 = sbr.rel (%p305) target = $region36
        $region35: #{tpu_custom_call.1} parent=11 // pred_region
          _
        $region36: #{tpu_custom_call.1} parent=11 // pred_fallthru
          _
        // Predicated region
        $region37: #{tpu_custom_call.1} parent=11 // pred_check
          %p308 = pneg %p219
        $region38: #{tpu_custom_call.1} parent=11 // pred_check_branch
          %310 = sbr.rel (%p308) target = $region40
        $region39: #{tpu_custom_call.1} parent=11 // pred_region
          _
        $region40: #{tpu_custom_call.1} parent=11 // pred_fallthru
          _
      $region12: #{tpu_custom_call.1} parent=5 // pred_fallthru
        _
      %p311 = scmp.lt.s32.totalorder %s20, 2
      // Predicated region
      $region41: #{tpu_custom_call.1} parent=5 // pred_check
        %p312 = pneg %p311
      $region42: #{tpu_custom_call.1} parent=5 // pred_check_branch
        %314 = sbr.rel (%p312) target = $region44
      $region43: #{tpu_custom_call.1} parent=5 // pred_region
        // Predicated region
        $region45: #{tpu_custom_call.1} parent=43 // pred_check
          %p315 = pneg %p40
        $region46: #{tpu_custom_call.1} parent=43 // pred_check_branch
          %317 = sbr.rel (%p315) target = $region48
        $region47: #{tpu_custom_call.1} parent=43 // pred_region
          %s318 = smul.u32 2, %s20
          %p319 = scmp.lt.s32.totalorder %s318, 3
          %s320 = scalar_select %p319, %s318, 3
          %s321 = smul.addr %s320, 8
          %s322 = scalar_lea.vmem %s0, %s321
          %s323 = smul.u32 2, %s20
        $region48: #{tpu_custom_call.1} parent=43 // pred_fallthru
          _
        // Predicated region
        $region49: #{tpu_custom_call.1} parent=43 // pred_check
          %p324 = pneg %p66
        $region50: #{tpu_custom_call.1} parent=43 // pred_check_branch
          %326 = sbr.rel (%p324) target = $region52
        $region51: #{tpu_custom_call.1} parent=43 // pred_region
          %s327 = smul.u32 2, %s20
          %p328 = scmp.lt.s32.totalorder %s327, 3
          %s329 = scalar_select %p328, %s327, 3
          %s330 = smul.addr %s329, 8
          %s331 = scalar_lea.vmem %s1, %s330
          %s332 = smul.u32 2, %s20
        $region52: #{tpu_custom_call.1} parent=43 // pred_fallthru
          _
      $region44: #{tpu_custom_call.1} parent=5 // pred_fallthru
        _
      %p333 = scmp.le.s32.totalorder 1, %s20
      %p334 = scmp.lt.s32.totalorder %s20, 3
      %p335 = pnand %p333, %p334
      %p336 = pneg %p335
      // Predicated region
      $region53: #{tpu_custom_call.1} parent=5 // pred_check
        _
      $region54: #{tpu_custom_call.1} parent=5 // pred_check_branch
        %338 = sbr.rel (%p335) target = $region56
      $region55: #{tpu_custom_call.1} parent=5 // pred_region
        %s339 = ssub.s32 %s20, 1
        // Predicated region
        $region57: #{tpu_custom_call.1} parent=55 // pred_check
          %p340 = pneg %p93
        $region58: #{tpu_custom_call.1} parent=55 // pred_check_branch
          %342 = sbr.rel (%p340) target = $region60
        $region59: #{tpu_custom_call.1} parent=55 // pred_region
          %343 = dma.done [#allocation3], 256
        $region60: #{tpu_custom_call.1} parent=55 // pred_fallthru
          _
        // Predicated region
        $region61: #{tpu_custom_call.1} parent=55 // pred_check
          %p344 = pneg %p114
        $region62: #{tpu_custom_call.1} parent=55 // pred_check_branch
          %346 = sbr.rel (%p344) target = $region64
        $region63: #{tpu_custom_call.1} parent=55 // pred_region
          %347 = dma.done [#allocation6], 512
        $region64: #{tpu_custom_call.1} parent=55 // pred_fallthru
          _
        // Predicated region
        $region65: #{tpu_custom_call.1} parent=55 // pred_check
          %p348 = pneg %p135
        $region66: #{tpu_custom_call.1} parent=55 // pred_check_branch
          %350 = sbr.rel (%p348) target = $region68
        $region67: #{tpu_custom_call.1} parent=55 // pred_region
          %351 = dma.done [#allocation6], 256
        $region68: #{tpu_custom_call.1} parent=55 // pred_fallthru
          _
        %s352 = smul.u32 2, %s25
        %p353 = scmp.lt.s32.totalorder %s352, 3
        %s354 = scalar_select %p353, %s352, 3
        %s355 = smul.addr %s354, 8
        %s356 = scalar_lea.vmem %s0, %s355
        %p357 = pneg %p46
        %p358 = pneg %p43
        %s359 = smul.u32 2, %s25
        %p360 = scmp.lt.s32.totalorder %s359, 3
        %s361 = scalar_select %p360, %s359, 3
        %s362 = smul.addr %s361, 8
        %s363 = scalar_lea.vmem %s1, %s362
        %p364 = pneg %p72
        %p365 = pneg %p69
        %p366 = pneg %p93
        %p367 = pneg %p90
        %p368 = pneg %p114
        %p369 = pneg %p111
        %p370 = pneg %p135
        %p371 = pneg %p132
        %p372 = pneg %p156
        %p373 = pneg %p153
        %p374 = pneg %p177
        %p375 = pneg %p174
        %p376 = pneg %p198
        %p377 = pneg %p195
        %p378 = pneg %p219
        %p379 = pneg %p216
        %p380 = pneg %p245
        %p381 = pneg %p242
        %s382 = sand.u32 %s232, 1
        %s383 = scalar_lea.sflag [#allocation4], %s382
        %s384 = sand.u32 %s232, 1
        %s385 = smul.addr %s384, 16
        %s386 = scalar_lea.vmem [#allocation8], %s385
        %s387 = smul.u32 2, %s25
        %p388 = scmp.lt.s32.totalorder %s387, 3
        %s389 = scalar_select %p388, %s387, 3
        %s390 = smul.addr %s389, 8
        %s391 = scalar_lea.vmem %s0, %s390
        %s392 = smul.u32 2, %s25
        %s393 = smul.u32 2, %s25
        %p394 = scmp.lt.s32.totalorder %s393, 3
        %s395 = scalar_select %p394, %s393, 3
        %s396 = smul.addr %s395, 8
        %s397 = scalar_lea.vmem %s1, %s396
        %s398 = smul.u32 2, %s25
        %s399 = smul.u32 2, %s25
        %v400 = vld [vmem:[%s391] sm:$0xff]
        %v401 = vld [vmem:[%s391 + $0x8] sm:$0xff]
        %v402 = vld [vmem:[%s397] sm:$0xff]
        %v403 = vld [vmem:[%s397 + $0x8] sm:$0xff]
        %v404 = vld [vmem:[#allocation2] sm:$0xff]
        %v405 = vld [vmem:[#allocation2 + $0x8] sm:$0xff]
        %v406 = vld [vmem:[#allocation5] sm:$0xff]
        %v407 = vld [vmem:[#allocation5 + $0x8] sm:$0xff]
        %v408 = vld [vmem:[#allocation5 + $0x10] sm:$0xff]
        %v409 = vld [vmem:[#allocation5 + $0x18] sm:$0xff]
        %vm410 = vcmask 261120
        %v412 = vsel %vm410, %v402, 0
        %v415 = vsel %vm410, %v403, 0
        %417 = vmatprep.subr.mxu0 0.0
        %418 = vmatpush1.msra.mxu0 %v406
        %419 = vmatprep.subr.mxu0 0.0
        %420 = vmatpush1.msra.mxu0 %v407
        %421 = vmatprep.subr.mxu0 0.0
        %422 = vmatpush1.msra.mxu0 %v408
        %423 = vmatprep.subr.mxu0 0.0
        %424 = vmatpush1.msra.mxu0 %v409
        %425 = vmatprep.subr.mxu0 0.0
        %426 = vmatpush1.msra.mxu0 0.0
        %427 = vmatprep.subr.mxu0 0.0
        %428 = vmatpush1.msra.mxu0 0.0
        %429 = vmatprep.subr.mxu0 0.0
        %430 = vmatpush1.msra.mxu0 0.0
        %431 = vmatprep.subr.mxu0 0.0
        %432 = vmatpush1.msra.mxu0 0.0
        %433 = vmatprep.subr.mxu0 0.0
        %434 = vmatpush1.msra.mxu0 0.0
        %435 = vmatprep.subr.mxu0 0.0
        %436 = vmatpush1.msra.mxu0 0.0
        %437 = vmatprep.subr.mxu0 0.0
        %438 = vmatpush1.msra.mxu0 0.0
        %439 = vmatprep.subr.mxu0 0.0
        %440 = vmatpush1.msra.mxu0 0.0
        %441 = vmatprep.subr.mxu0 0.0
        %442 = vmatpush1.msra.mxu0 0.0
        %443 = vmatprep.subr.mxu0 0.0
        %444 = vmatpush1.msra.mxu0 0.0
        %445 = vmatprep.subr.mxu0 0.0
        %446 = vmatpush1.msra.mxu0 0.0
        %447 = vmatprep.subr.mxu0 0.0
        %448 = vmatpush1.msra.mxu0 0.0
        %449 = vmatprep.subr.mxu0 0.0
        %450 = vmatpush1.msra.mxu0 0.0
        %451 = vmatprep.subr.mxu0 0.0
        %452 = vmatpush1.msra.mxu0 0.0
        %453 = vmatprep.subr.mxu0 0.0
        %454 = vmatpush1.msra.mxu0 0.0
        %455 = vmatprep.subr.mxu0 0.0
        %456 = vmatpush1.msra.mxu0 0.0
        %457 = vmatprep.subr.mxu0 0.0
        %458 = vmatpush1.msra.mxu0 0.0
        %459 = vmatprep.subr.mxu0 0.0
        %460 = vmatpush1.msra.mxu0 0.0
        %461 = vmatprep.subr.mxu0 0.0
        %462 = vmatpush1.msra.mxu0 0.0
        %463 = vmatprep.subr.mxu0 0.0
        %464 = vmatpush1.msra.mxu0 0.0
        %465 = vmatprep.subr.mxu0 0.0
        %466 = vmatpush1.msra.mxu0 0.0
        %467 = vmatprep.subr.mxu0 0.0
        %468 = vmatpush1.msra.mxu0 0.0
        %469 = vmatprep.subr.mxu0 0.0
        %470 = vmatpush1.msra.mxu0 0.0
        %471 = vmatprep.subr.mxu0 0.0
        %472 = vmatpush1.msra.mxu0 0.0
        %473 = vmatprep.subr.mxu0 0.0
        %474 = vmatpush1.msra.mxu0 0.0
        %475 = vmatprep.subr.mxu0 0.0
        %476 = vmatpush1.msra.mxu0 0.0
        %477 = vmatprep.subr.mxu0 0.0
        %478 = vmatpush1.msra.mxu0 0.0
        %479 = vmatprep.subr.mxu0 0.0
        %480 = vmatpush1.msra.mxu0 0.0
        %481 = vmatprep.mubr.f32.mxu0 0.0
        %482 = vmatmul.mubr.f32.gmra.mrb[0].mxu0 %v412
        %v483 = vpop.f32.mrb[0].mxu0
        %v484 = vadd.f32 0.0, %v483
        %v485 = vpop.f32.mrb[0].mxu0
        %486 = vmatprep.mubr.f32.mxu0 0.0
        %487 = vmatmul.mubr.f32.gmra.mrb[0].mxu0 %v415
        %v488 = vpop.f32.mrb[0].mxu0
        %v489 = vadd.f32 0.0, %v488
        %v490 = vpop.f32.mrb[0].mxu0
        %491 = vdwg.mxu0
        %vm492 = vcmask 130048
        %v494 = vsel %vm492, %v400, 0
        %v497 = vsel %vm492, %v401, 0
        %499 = vmatprep.subr.mxu0 0.0
        %500 = vmatpush1.msra.mxu0 %v404
        %501 = vmatprep.subr.mxu0 0.0
        %502 = vmatpush1.msra.mxu0 %v405
        %503 = vmatprep.subr.mxu0 0.0
        %504 = vmatpush1.msra.mxu0 0.0
        %505 = vmatprep.subr.mxu0 0.0
        %506 = vmatpush1.msra.mxu0 0.0
        %507 = vmatprep.subr.mxu0 0.0
        %508 = vmatpush1.msra.mxu0 0.0
        %509 = vmatprep.subr.mxu0 0.0
        %510 = vmatpush1.msra.mxu0 0.0
        %511 = vmatprep.subr.mxu0 0.0
        %512 = vmatpush1.msra.mxu0 0.0
        %513 = vmatprep.subr.mxu0 0.0
        %514 = vmatpush1.msra.mxu0 0.0
        %515 = vmatprep.subr.mxu0 0.0
        %516 = vmatpush1.msra.mxu0 0.0
        %517 = vmatprep.subr.mxu0 0.0
        %518 = vmatpush1.msra.mxu0 0.0
        %519 = vmatprep.subr.mxu0 0.0
        %520 = vmatpush1.msra.mxu0 0.0
        %521 = vmatprep.subr.mxu0 0.0
        %522 = vmatpush1.msra.mxu0 0.0
        %523 = vmatprep.subr.mxu0 0.0
        %524 = vmatpush1.msra.mxu0 0.0
        %525 = vmatprep.subr.mxu0 0.0
        %526 = vmatpush1.msra.mxu0 0.0
        %527 = vmatprep.subr.mxu0 0.0
        %528 = vmatpush1.msra.mxu0 0.0
        %529 = vmatprep.subr.mxu0 0.0
        %530 = vmatpush1.msra.mxu0 0.0
        %531 = vmatprep.subr.mxu0 0.0
        %532 = vmatpush1.msra.mxu0 0.0
        %533 = vmatprep.subr.mxu0 0.0
        %534 = vmatpush1.msra.mxu0 0.0
        %535 = vmatprep.subr.mxu0 0.0
        %536 = vmatpush1.msra.mxu0 0.0
        %537 = vmatprep.subr.mxu0 0.0
        %538 = vmatpush1.msra.mxu0 0.0
        %539 = vmatprep.subr.mxu0 0.0
        %540 = vmatpush1.msra.mxu0 0.0
        %541 = vmatprep.subr.mxu0 0.0
        %542 = vmatpush1.msra.mxu0 0.0
        %543 = vmatprep.subr.mxu0 0.0
        %544 = vmatpush1.msra.mxu0 0.0
        %545 = vmatprep.subr.mxu0 0.0
        %546 = vmatpush1.msra.mxu0 0.0
        %547 = vmatprep.subr.mxu0 0.0
        %548 = vmatpush1.msra.mxu0 0.0
        %549 = vmatprep.subr.mxu0 0.0
        %550 = vmatpush1.msra.mxu0 0.0
        %551 = vmatprep.subr.mxu0 0.0
        %552 = vmatpush1.msra.mxu0 0.0
        %553 = vmatprep.subr.mxu0 0.0
        %554 = vmatpush1.msra.mxu0 0.0
        %555 = vmatprep.subr.mxu0 0.0
        %556 = vmatpush1.msra.mxu0 0.0
        %557 = vmatprep.subr.mxu0 0.0
        %558 = vmatpush1.msra.mxu0 0.0
        %559 = vmatprep.subr.mxu0 0.0
        %560 = vmatpush1.msra.mxu0 0.0
        %561 = vmatprep.subr.mxu0 0.0
        %562 = vmatpush1.msra.mxu0 0.0
        %563 = vmatprep.mubr.f32.mxu0 0.0
        %564 = vmatmul.mubr.f32.gmra.mrb[0].mxu0 %v494
        %v565 = vpop.f32.mrb[0].mxu0
        %v566 = vadd.f32 %v484, %v565
        %v567 = vpop.f32.mrb[0].mxu0
        %568 = vmatprep.mubr.f32.mxu0 0.0
        %569 = vmatmul.mubr.f32.gmra.mrb[0].mxu0 %v497
        %v570 = vpop.f32.mrb[0].mxu0
        %v571 = vadd.f32 %v489, %v570
        %v572 = vpop.f32.mrb[0].mxu0
        %573 = vdwg.mxu0
        %v574 = vld [vmem:[%s6] sm:$0x1]
        %v576 = vlaneseq
        %v577 = vshrl.u32 %v576, 7
        %v578 = vsub.s32 0, %v577
        %v579 = vrot.slane %v574, %v578
        %v581 = vadd.f32 %v566, %v579
        %v582 = vadd.f32 %v571, %v579
        %v583 = vxor.u32 %v581, 2147483648
        %v584 = vxor.u32 %v582, 2147483648
        %v585 = vmul.f32 %v583, 1.442695
        %v586 = vpow.pop %v585
        %v587 = vmul.f32 %v584, 1.442695
        %v588 = vpow.pop %v587
        %v589 = vadd.f32 %v586, 1.0
        %v590 = vadd.f32 %v588, 1.0
        %v591 = vrcp.pop %v589
        %v592 = vmul.f32 1.0, %v591
        %v593 = vrcp.pop %v590
        %v594 = vmul.f32 1.0, %v593
        %v595 = vld [vmem:[#allocation7] sm:$0xff]
        %v596 = vld [vmem:[#allocation7 + $0x8] sm:$0xff]
        %v597 = vld [vmem:[%s5] sm:$0xff]
        %v598 = vld [vmem:[%s5 + $0x8] sm:$0xff]
        %v599 = vld [vmem:[%s5 + $0x10] sm:$0xff]
        %v600 = vld [vmem:[%s5 + $0x18] sm:$0xff]
        %v601 = vld [vmem:[%s7] sm:$0x1]
        %v603 = vlaneseq
        %v604 = vshrl.u32 %v603, 7
        %v605 = vsub.s32 0, %v604
        %v606 = vrot.slane %v601, %v605
        %608 = vmatprep.subr.mxu0 0.0
        %609 = vmatpush1.msra.mxu0 %v595
        %610 = vmatprep.subr.mxu0 0.0
        %611 = vmatpush1.msra.mxu0 %v596
        %612 = vmatprep.subr.mxu0 0.0
        %613 = vmatpush1.msra.mxu0 0.0
        %614 = vmatprep.subr.mxu0 0.0
        %615 = vmatpush1.msra.mxu0 0.0
        %616 = vmatprep.subr.mxu0 0.0
        %617 = vmatpush1.msra.mxu0 0.0
        %618 = vmatprep.subr.mxu0 0.0
        %619 = vmatpush1.msra.mxu0 0.0
        %620 = vmatprep.subr.mxu0 0.0
        %621 = vmatpush1.msra.mxu0 0.0
        %622 = vmatprep.subr.mxu0 0.0
        %623 = vmatpush1.msra.mxu0 0.0
        %624 = vmatprep.subr.mxu0 0.0
        %625 = vmatpush1.msra.mxu0 0.0
        %626 = vmatprep.subr.mxu0 0.0
        %627 = vmatpush1.msra.mxu0 0.0
        %628 = vmatprep.subr.mxu0 0.0
        %629 = vmatpush1.msra.mxu0 0.0
        %630 = vmatprep.subr.mxu0 0.0
        %631 = vmatpush1.msra.mxu0 0.0
        %632 = vmatprep.subr.mxu0 0.0
        %633 = vmatpush1.msra.mxu0 0.0
        %634 = vmatprep.subr.mxu0 0.0
        %635 = vmatpush1.msra.mxu0 0.0
        %636 = vmatprep.subr.mxu0 0.0
        %637 = vmatpush1.msra.mxu0 0.0
        %638 = vmatprep.subr.mxu0 0.0
        %639 = vmatpush1.msra.mxu0 0.0
        %640 = vmatprep.subr.mxu0 0.0
        %641 = vmatpush1.msra.mxu0 0.0
        %642 = vmatprep.subr.mxu0 0.0
        %643 = vmatpush1.msra.mxu0 0.0
        %644 = vmatprep.subr.mxu0 0.0
        %645 = vmatpush1.msra.mxu0 0.0
        %646 = vmatprep.subr.mxu0 0.0
        %647 = vmatpush1.msra.mxu0 0.0
        %648 = vmatprep.subr.mxu0 0.0
        %649 = vmatpush1.msra.mxu0 0.0
        %650 = vmatprep.subr.mxu0 0.0
        %651 = vmatpush1.msra.mxu0 0.0
        %652 = vmatprep.subr.mxu0 0.0
        %653 = vmatpush1.msra.mxu0 0.0
        %654 = vmatprep.subr.mxu0 0.0
        %655 = vmatpush1.msra.mxu0 0.0
        %656 = vmatprep.subr.mxu0 0.0
        %657 = vmatpush1.msra.mxu0 0.0
        %658 = vmatprep.subr.mxu0 0.0
        %659 = vmatpush1.msra.mxu0 0.0
        %660 = vmatprep.subr.mxu0 0.0
        %661 = vmatpush1.msra.mxu0 0.0
        %662 = vmatprep.subr.mxu0 0.0
        %663 = vmatpush1.msra.mxu0 0.0
        %664 = vmatprep.subr.mxu0 0.0
        %665 = vmatpush1.msra.mxu0 0.0
        %666 = vmatprep.subr.mxu0 0.0
        %667 = vmatpush1.msra.mxu0 0.0
        %668 = vmatprep.subr.mxu0 0.0
        %669 = vmatpush1.msra.mxu0 0.0
        %670 = vmatprep.subr.mxu0 0.0
        %671 = vmatpush1.msra.mxu0 0.0
        %672 = vmatprep.mubr.f32.mxu0 0.0
        %673 = vmatmul.mubr.f32.gmra.mrb[0].mxu0 %v494
        %v674 = vpop.f32.mrb[0].mxu0
        %v675 = vadd.f32 %v606, %v674
        %v676 = vpop.f32.mrb[0].mxu0
        %677 = vmatprep.mubr.f32.mxu0 0.0
        %678 = vmatmul.mubr.f32.gmra.mrb[0].mxu0 %v497
        %v679 = vpop.f32.mrb[0].mxu0
        %v680 = vadd.f32 %v606, %v679
        %v681 = vpop.f32.mrb[0].mxu0
        %682 = vdwg.mxu0
        %v683 = vld [vmem:[%s8] sm:$0x1]
        %v685 = vlaneseq
        %v686 = vshrl.u32 %v685, 7
        %v687 = vsub.s32 0, %v686
        %v688 = vrot.slane %v683, %v687
        %690 = vmatprep.subr.mxu0 0.0
        %691 = vmatpush1.msra.mxu0 %v597
        %692 = vmatprep.subr.mxu0 0.0
        %693 = vmatpush1.msra.mxu0 %v598
        %694 = vmatprep.subr.mxu0 0.0
        %695 = vmatpush1.msra.mxu0 %v599
        %696 = vmatprep.subr.mxu0 0.0
        %697 = vmatpush1.msra.mxu0 %v600
        %698 = vmatprep.subr.mxu0 0.0
        %699 = vmatpush1.msra.mxu0 0.0
        %700 = vmatprep.subr.mxu0 0.0
        %701 = vmatpush1.msra.mxu0 0.0
        %702 = vmatprep.subr.mxu0 0.0
        %703 = vmatpush1.msra.mxu0 0.0
        %704 = vmatprep.subr.mxu0 0.0
        %705 = vmatpush1.msra.mxu0 0.0
        %706 = vmatprep.subr.mxu0 0.0
        %707 = vmatpush1.msra.mxu0 0.0
        %708 = vmatprep.subr.mxu0 0.0
        %709 = vmatpush1.msra.mxu0 0.0
        %710 = vmatprep.subr.mxu0 0.0
        %711 = vmatpush1.msra.mxu0 0.0
        %712 = vmatprep.subr.mxu0 0.0
        %713 = vmatpush1.msra.mxu0 0.0
        %714 = vmatprep.subr.mxu0 0.0
        %715 = vmatpush1.msra.mxu0 0.0
        %716 = vmatprep.subr.mxu0 0.0
        %717 = vmatpush1.msra.mxu0 0.0
        %718 = vmatprep.subr.mxu0 0.0
        %719 = vmatpush1.msra.mxu0 0.0
        %720 = vmatprep.subr.mxu0 0.0
        %721 = vmatpush1.msra.mxu0 0.0
        %722 = vmatprep.subr.mxu0 0.0
        %723 = vmatpush1.msra.mxu0 0.0
        %724 = vmatprep.subr.mxu0 0.0
        %725 = vmatpush1.msra.mxu0 0.0
        %726 = vmatprep.subr.mxu0 0.0
        %727 = vmatpush1.msra.mxu0 0.0
        %728 = vmatprep.subr.mxu0 0.0
        %729 = vmatpush1.msra.mxu0 0.0
        %730 = vmatprep.subr.mxu0 0.0
        %731 = vmatpush1.msra.mxu0 0.0
        %732 = vmatprep.subr.mxu0 0.0
        %733 = vmatpush1.msra.mxu0 0.0
        %734 = vmatprep.subr.mxu0 0.0
        %735 = vmatpush1.msra.mxu0 0.0
        %736 = vmatprep.subr.mxu0 0.0
        %737 = vmatpush1.msra.mxu0 0.0
        %738 = vmatprep.subr.mxu0 0.0
        %739 = vmatpush1.msra.mxu0 0.0
        %740 = vmatprep.subr.mxu0 0.0
        %741 = vmatpush1.msra.mxu0 0.0
        %742 = vmatprep.subr.mxu0 0.0
        %743 = vmatpush1.msra.mxu0 0.0
        %744 = vmatprep.subr.mxu0 0.0
        %745 = vmatpush1.msra.mxu0 0.0
        %746 = vmatprep.subr.mxu0 0.0
        %747 = vmatpush1.msra.mxu0 0.0
        %748 = vmatprep.subr.mxu0 0.0
        %749 = vmatpush1.msra.mxu0 0.0
        %750 = vmatprep.subr.mxu0 0.0
        %751 = vmatpush1.msra.mxu0 0.0
        %752 = vmatprep.subr.mxu0 0.0
        %753 = vmatpush1.msra.mxu0 0.0
        %754 = vmatprep.mubr.f32.mxu0 0.0
        %755 = vmatmul.mubr.f32.gmra.mrb[0].mxu0 %v412
        %v756 = vpop.f32.mrb[0].mxu0
        %v757 = vadd.f32 %v688, %v756
        %v758 = vpop.f32.mrb[0].mxu0
        %759 = vmatprep.mubr.f32.mxu0 0.0
        %760 = vmatmul.mubr.f32.gmra.mrb[0].mxu0 %v415
        %v761 = vpop.f32.mrb[0].mxu0
        %v762 = vadd.f32 %v688, %v761
        %v763 = vpop.f32.mrb[0].mxu0
        %764 = vdwg.mxu0
        %v765 = vmul.f32 %v592, %v757
        %v766 = vmul.f32 %v594, %v762
        %v767 = vadd.f32 %v675, %v765
        %v768 = vadd.f32 %v680, %v766
        %v769 = vtanh.pop %v767
        %v770 = vtanh.pop %v768
        %v771 = vsub.f32 %v402, %v769
        %v772 = vsub.f32 %v403, %v770
        %775 = vrot.lane.b32.xlu0 %v771, 32
        %v776 = vpop.permute.xlu0 %775
        %777 = vrot.lane.b32.xlu0 %v772, 32
        %v778 = vpop.permute.xlu0 %777
        %v781 = vmul.f32 %v592, %v776
        %v782 = vmul.f32 %v594, %v778
        %785 = vrot.lane.b32.xlu0 %v781, 96
        %v786 = vpop.permute.xlu0 %785
        %787 = vrot.lane.b32.xlu0 %v782, 96
        %v788 = vpop.permute.xlu0 %787
        %v791 = vadd.f32 %v769, %v786
        %v792 = vadd.f32 %v770, %v788
        %793 = vst.msk [vmem:[%s386] sm:$0xff] %vm410, %v791
        %794 = vst.msk [vmem:[%s386 + $0x8] sm:$0xff] %vm410, %v792
        %s795 = sand.u32 %s232, 1
        %s796 = scalar_lea.sflag [#allocation4], %s795
        %s797 = sand.u32 %s232, 1
        %s798 = smul.addr %s797, 16
        %s799 = scalar_lea.vmem [#allocation8], %s798
        // Predicated region
        $region69: #{tpu_custom_call.1} parent=55 // pred_check
          %p800 = pneg %p242
        $region70: #{tpu_custom_call.1} parent=55 // pred_check_branch
          %802 = sbr.rel (%p800) target = $region72
        $region71: #{tpu_custom_call.1} parent=55 // pred_region
          %s803 = smul.u32 2, %s25
          %s805 = ssub.s32 256, 256
          %806 = vsyncadd %s796, %s805
          %s807 = smul.addr %s803, 128
          %s808 = scalar_lea.hbm %s9, %s807
          %s809 = sshll.u32 %s799, 4
          %s810 = int_to_ptr.vmem [resolvable:$true] %s809
          %815 = dma.vmem_to_hbm [thread:$0]  %s810, 256, %s808, %s796, 128, 128, 8
        $region72: #{tpu_custom_call.1} parent=55 // pred_fallthru
          _
      $region56: #{tpu_custom_call.1} parent=5 // pred_fallthru
        _
      %p816 = scmp.le.s32.totalorder 2, %s20
      // Predicated region
      $region73: #{tpu_custom_call.1} parent=5 // pred_check
        %p817 = pneg %p816
      $region74: #{tpu_custom_call.1} parent=5 // pred_check_branch
        %819 = sbr.rel (%p817) target = $region76
      $region75: #{tpu_custom_call.1} parent=5 // pred_region
        %s820 = ssub.s32 %s20, 2
        // Predicated region
        $region77: #{tpu_custom_call.1} parent=75 // pred_check
          %p821 = pneg %p248
        $region78: #{tpu_custom_call.1} parent=75 // pred_check_branch
          %823 = sbr.rel (%p821) target = $region80
        $region79: #{tpu_custom_call.1} parent=75 // pred_region
          %s824 = sand.u32 %s233, 1
          %s825 = scalar_lea.sflag [#allocation4], %s824
          %s826 = sand.u32 %s233, 1
          %s827 = smul.addr %s826, 16
          %s828 = scalar_lea.vmem [#allocation8], %s827
          %829 = dma.done %s825, 256
        $region80: #{tpu_custom_call.1} parent=75 // pred_fallthru
          _
      $region76: #{tpu_custom_call.1} parent=5 // pred_fallthru
        _
    $region6: #{tpu_custom_call.1} parent=1 // loop_footer
      %s24 = sadd.s32 1, %s20
    $region7: #{tpu_custom_call.1} parent=1 // loop_footer_branch
      %19 = sbr.rel target = $region3
    $region8: #{tpu_custom_call.1} parent=1 // loop_exit
      _
    %830 = vsyncpa [#allocation3], 1
    %s831 = scalar_lea.sflag [#allocation3], 1
    %832 = vsyncpa %s831, 1
    %833 = vsyncpa [#allocation6], 1
    %834 = vsyncpa [#allocation4], 1
    %s835 = scalar_lea.sflag [#allocation4], 1
    %836 = vsyncpa %s835, 1

// kernel: tpu_custom_call.1
$region0: #{tpu_custom_call.1}
  #allocation0 [shape = 'u32[]', space=smem, size = 0x4, offset = 0x4, fixed_abs, tag = 'smem constant byte address 0x4 - core index']
  #allocation1 [shape = 'u32[144,128]{1,0:T(1,128)}', space=vmem, size = 0x12000, scoped, tag = 'internal scratch']
  %s0 = inlined_call_operand.vmem [shape: f32[32,16], index: 0, kind: input, shape index: {}]
  %s1 = inlined_call_operand.vmem [shape: f32[32,32], index: 1, kind: input, shape index: {}]
  %s2 = inlined_call_operand.hbm [shape: f32[16,64], index: 2, kind: input, shape index: {}]
  %s3 = inlined_call_operand.hbm [shape: f32[32,64], index: 3, kind: input, shape index: {}]
  %s4 = inlined_call_operand.hbm [shape: f32[16,32], index: 4, kind: input, shape index: {}]
  %s5 = inlined_call_operand.vmem [shape: f32[32,32], index: 5, kind: input, shape index: {}]
  %s6 = inlined_call_operand.vmem [shape: f32[1,64], index: 6, kind: input, shape index: {}]
  %s7 = inlined_call_operand.vmem [shape: f32[1,32], index: 7, kind: input, shape index: {}]
  %s8 = inlined_call_operand.vmem [shape: f32[1,32], index: 8, kind: input, shape index: {}]
  %s9 = inlined_call_operand.hbm [shape: f32[32,32], index: 9, kind: output, shape index: {}]
  %s10 = sld [smem:[#allocation0]]
  $region81: #{tpu_custom_call.1} parent=0
    _
  %s12 = ssub.s32 1, %s10
  %s13 = scalar_select 0, %s12, %s10
  $region1: #{tpu_custom_call.1} parent=0
    #allocation2 [shape = 'u8[8192]{0}', space=vmem, size = 0x2000, scoped, tag = 'input window, operand 2, single buffered']
    #allocation3 [shape = 's32[2]{0}', space=sflag, size = 0x8, scoped, tag = 'scoped memory for tpu_custom_call.1']
    #allocation4 [shape = 's32[2]{0}', space=sflag, size = 0x8, scoped, tag = 'scoped memory for tpu_custom_call.1']
    #allocation5 [shape = 'u8[16384]{0}', space=vmem, size = 0x4000, scoped, tag = 'input window, operand 3, single buffered']
    #allocation6 [shape = 's32[1]{0}', space=sflag, size = 0x4, scoped, tag = 'scoped memory for tpu_custom_call.1']
    #allocation7 [shape = 'u8[8192]{0}', space=vmem, size = 0x2000, scoped, tag = 'input window, operand 4, single buffered']
    #allocation8 [shape = 'u8[16384]{0}', space=vmem, size = 0x4000, scoped, tag = 'output window, operand 0']
    %14 = vsyncpa [#allocation3], 0
    %15 = vsyncpa [#allocation6], 0
    %16 = vsyncpa [#allocation4], 0
    %s17 = scalar_lea.sflag [#allocation4], 1
    %18 = vsyncpa %s17, 0
    loop: start=0, step=1, limit=4
    $region2: #{tpu_custom_call.1} parent=1 // loop_pre_header
      _
    $region3: #{tpu_custom_call.1} parent=1 // loop_header
      %s20 = sphi 0, %s24
      %p21 = scmp.ge.s32.totalorder %s20, 4
      %s30 = sphi 0, %s32
      %s33 = sphi 0, %s30
      %s34 = sphi 0, %s33
      %s50 = sphi 0, %s34
      %s56 = sphi 0, %s58
      %s59 = sphi 0, %s56
      %s60 = sphi 0, %s59
      %s76 = sphi 0, %s60
      %s80 = sphi 0, %s80
      %s82 = sphi 0, %s80
      %s83 = sphi 0, %s82
      %s97 = sphi 0, %s83
      %s101 = sphi 0, %s101
      %s103 = sphi 0, %s101
      %s104 = sphi 0, %s103
      %s118 = sphi 0, %s104
      %s122 = sphi 0, %s122
      %s124 = sphi 0, %s122
      %s125 = sphi 0, %s124
      %s139 = sphi 0, %s125
      %s143 = sphi 0, %s143
      %s145 = sphi 0, %s143
      %s146 = sphi 0, %s145
      %s160 = sphi 0, %s146
      %s164 = sphi 0, %s164
      %s166 = sphi 0, %s164
      %s167 = sphi 0, %s166
      %s181 = sphi 0, %s167
      %s185 = sphi 0, %s185
      %s187 = sphi 0, %s185
      %s188 = sphi 0, %s187
      %s202 = sphi 0, %s188
      %s206 = sphi 0, %s206
      %s208 = sphi 0, %s206
      %s209 = sphi 0, %s208
      %s223 = sphi 0, %s209
      %s229 = sphi 0, %s231
      %s232 = sphi 0, %s229
      %s233 = sphi 0, %s232
      %s249 = sphi 0, %s233
    $region4: #{tpu_custom_call.1} parent=1 // loop_header_branch
      %23 = sbr.rel (%p21) target = $region8
    $region5: #{tpu_custom_call.1} parent=1 // loop_body
      %s25 = ssub.s32 %s20, 1
      %s26 = ssub.s32 %s20, 2
      %s27 = sadd.s32 %s20, 1
      %s28 = ssub.s32 %s20, %s27
      %p29 = scmp.eq.s32.totalorder %s28, 0
      %s31 = sadd.s32 %s30, 1
      %s32 = scalar_select %p29, %s30, %s31
      %p35 = pneg %p29
      %p36 = scmp.eq.s32.totalorder %s20, 1
      %p37 = por %p35, %p36
      %p38 = scmp.ne.s32.totalorder %s30, %s33
      %p39 = scmp.eq.s32.totalorder %s20, 0
      %p40 = por %p38, %p39
      %p41 = scmp.ne.s32.totalorder %s30, %s33
      %p42 = scmp.eq.s32.totalorder %s25, 1
      %p43 = por %p41, %p42
      %p44 = scmp.ne.s32.totalorder %s33, %s34
      %p45 = scmp.eq.s32.totalorder %s25, 0
      %p46 = por %p44, %p45
      %p47 = scmp.ne.s32.totalorder %s33, %s34
      %p48 = scmp.eq.s32.totalorder %s26, 1
      %p49 = por %p47, %p48
      %p51 = scmp.ne.s32.totalorder %s34, %s50
      %p52 = scmp.eq.s32.totalorder %s26, 0
      %p53 = por %p51, %p52
      %s54 = ssub.s32 %s20, %s27
      %p55 = scmp.eq.s32.totalorder %s54, 0
      %s57 = sadd.s32 %s56, 1
      %s58 = scalar_select %p55, %s56, %s57
      %p61 = pneg %p55
      %p62 = scmp.eq.s32.totalorder %s20, 1
      %p63 = por %p61, %p62
      %p64 = scmp.ne.s32.totalorder %s56, %s59
      %p65 = scmp.eq.s32.totalorder %s20, 0
      %p66 = por %p64, %p65
      %p67 = scmp.ne.s32.totalorder %s56, %s59
      %p68 = scmp.eq.s32.totalorder %s25, 1
      %p69 = por %p67, %p68
      %p70 = scmp.ne.s32.totalorder %s59, %s60
      %p71 = scmp.eq.s32.totalorder %s25, 0
      %p72 = por %p70, %p71
      %p73 = scmp.ne.s32.totalorder %s59, %s60
      %p74 = scmp.eq.s32.totalorder %s26, 1
      %p75 = por %p73, %p74
      %p77 = scmp.ne.s32.totalorder %s60, %s76
      %p78 = scmp.eq.s32.totalorder %s26, 0
      %p79 = por %p77, %p78
      %s81 = sadd.s32 %s80, 1
      %p84 = scmp.eq.s32.totalorder %s20, 1
      %p85 = scmp.ne.s32.totalorder %s80, %s82
      %p86 = scmp.eq.s32.totalorder %s20, 0
      %p87 = por %p85, %p86
      %p88 = scmp.ne.s32.totalorder %s80, %s82
      %p89 = scmp.eq.s32.totalorder %s25, 1
      %p90 = por %p88, %p89
      %p91 = scmp.ne.s32.totalorder %s82, %s83
      %p92 = scmp.eq.s32.totalorder %s25, 0
      %p93 = por %p91, %p92
      %p94 = scmp.ne.s32.totalorder %s82, %s83
      %p95 = scmp.eq.s32.totalorder %s26, 1
      %p96 = por %p94, %p95
      %p98 = scmp.ne.s32.totalorder %s83, %s97
      %p99 = scmp.eq.s32.totalorder %s26, 0
      %p100 = por %p98, %p99
      %s102 = sadd.s32 %s101, 1
      %p105 = scmp.eq.s32.totalorder %s20, 1
      %p106 = scmp.ne.s32.totalorder %s101, %s103
      %p107 = scmp.eq.s32.totalorder %s20, 0
      %p108 = por %p106, %p107
      %p109 = scmp.ne.s32.totalorder %s101, %s103
      %p110 = scmp.eq.s32.totalorder %s25, 1
      %p111 = por %p109, %p110
      %p112 = scmp.ne.s32.totalorder %s103, %s104
      %p113 = scmp.eq.s32.totalorder %s25, 0
      %p114 = por %p112, %p113
      %p115 = scmp.ne.s32.totalorder %s103, %s104
      %p116 = scmp.eq.s32.totalorder %s26, 1
      %p117 = por %p115, %p116
      %p119 = scmp.ne.s32.totalorder %s104, %s118
      %p120 = scmp.eq.s32.totalorder %s26, 0
      %p121 = por %p119, %p120
      %s123 = sadd.s32 %s122, 1
      %p126 = scmp.eq.s32.totalorder %s20, 1
      %p127 = scmp.ne.s32.totalorder %s122, %s124
      %p128 = scmp.eq.s32.totalorder %s20, 0
      %p129 = por %p127, %p128
      %p130 = scmp.ne.s32.totalorder %s122, %s124
      %p131 = scmp.eq.s32.totalorder %s25, 1
      %p132 = por %p130, %p131
      %p133 = scmp.ne.s32.totalorder %s124, %s125
      %p134 = scmp.eq.s32.totalorder %s25, 0
      %p135 = por %p133, %p134
      %p136 = scmp.ne.s32.totalorder %s124, %s125
      %p137 = scmp.eq.s32.totalorder %s26, 1
      %p138 = por %p136, %p137
      %p140 = scmp.ne.s32.totalorder %s125, %s139
      %p141 = scmp.eq.s32.totalorder %s26, 0
      %p142 = por %p140, %p141
      %s144 = sadd.s32 %s143, 1
      %p147 = scmp.eq.s32.totalorder %s20, 1
      %p148 = scmp.ne.s32.totalorder %s143, %s145
      %p149 = scmp.eq.s32.totalorder %s20, 0
      %p150 = por %p148, %p149
      %p151 = scmp.ne.s32.totalorder %s143, %s145
      %p152 = scmp.eq.s32.totalorder %s25, 1
      %p153 = por %p151, %p152
      %p154 = scmp.ne.s32.totalorder %s145, %s146
      %p155 = scmp.eq.s32.totalorder %s25, 0
      %p156 = por %p154, %p155
      %p157 = scmp.ne.s32.totalorder %s145, %s146
      %p158 = scmp.eq.s32.totalorder %s26, 1
      %p159 = por %p157, %p158
      %p161 = scmp.ne.s32.totalorder %s146, %s160
      %p162 = scmp.eq.s32.totalorder %s26, 0
      %p163 = por %p161, %p162
      %s165 = sadd.s32 %s164, 1
      %p168 = scmp.eq.s32.totalorder %s20, 1
      %p169 = scmp.ne.s32.totalorder %s164, %s166
      %p170 = scmp.eq.s32.totalorder %s20, 0
      %p171 = por %p169, %p170
      %p172 = scmp.ne.s32.totalorder %s164, %s166
      %p173 = scmp.eq.s32.totalorder %s25, 1
      %p174 = por %p172, %p173
      %p175 = scmp.ne.s32.totalorder %s166, %s167
      %p176 = scmp.eq.s32.totalorder %s25, 0
      %p177 = por %p175, %p176
      %p178 = scmp.ne.s32.totalorder %s166, %s167
      %p179 = scmp.eq.s32.totalorder %s26, 1
      %p180 = por %p178, %p179
      %p182 = scmp.ne.s32.totalorder %s167, %s181
      %p183 = scmp.eq.s32.totalorder %s26, 0
      %p184 = por %p182, %p183
      %s186 = sadd.s32 %s185, 1
      %p189 = scmp.eq.s32.totalorder %s20, 1
      %p190 = scmp.ne.s32.totalorder %s185, %s187
      %p191 = scmp.eq.s32.totalorder %s20, 0
      %p192 = por %p190, %p191
      %p193 = scmp.ne.s32.totalorder %s185, %s187
      %p194 = scmp.eq.s32.totalorder %s25, 1
      %p195 = por %p193, %p194
      %p196 = scmp.ne.s32.totalorder %s187, %s188
      %p197 = scmp.eq.s32.totalorder %s25, 0
      %p198 = por %p196, %p197
      %p199 = scmp.ne.s32.totalorder %s187, %s188
      %p200 = scmp.eq.s32.totalorder %s26, 1
      %p201 = por %p199, %p200
      %p203 = scmp.ne.s32.totalorder %s188, %s202
      %p204 = scmp.eq.s32.totalorder %s26, 0
      %p205 = por %p203, %p204
      %s207 = sadd.s32 %s206, 1
      %p210 = scmp.eq.s32.totalorder %s20, 1
      %p211 = scmp.ne.s32.totalorder %s206, %s208
      %p212 = scmp.eq.s32.totalorder %s20, 0
      %p213 = por %p211, %p212
      %p214 = scmp.ne.s32.totalorder %s206, %s208
      %p215 = scmp.eq.s32.totalorder %s25, 1
      %p216 = por %p214, %p215
      %p217 = scmp.ne.s32.totalorder %s208, %s209
      %p218 = scmp.eq.s32.totalorder %s25, 0
      %p219 = por %p217, %p218
      %p220 = scmp.ne.s32.totalorder %s208, %s209
      %p221 = scmp.eq.s32.totalorder %s26, 1
      %p222 = por %p220, %p221
      %p224 = scmp.ne.s32.totalorder %s209, %s223
      %p225 = scmp.eq.s32.totalorder %s26, 0
      %p226 = por %p224, %p225
      %s227 = ssub.s32 %s20, %s27
      %p228 = scmp.eq.s32.totalorder %s227, 0
      %s230 = sadd.s32 %s229, 1
      %s231 = scalar_select %p228, %s229, %s230
      %p234 = pneg %p228
      %p235 = scmp.eq.s32.totalorder %s20, 1
      %p236 = por %p234, %p235
      %p237 = scmp.ne.s32.totalorder %s229, %s232
      %p238 = scmp.eq.s32.totalorder %s20, 0
      %p239 = por %p237, %p238
      %p240 = scmp.ne.s32.totalorder %s229, %s232
      %p241 = scmp.eq.s32.totalorder %s25, 1
      %p242 = por %p240, %p241
      %p243 = scmp.ne.s32.totalorder %s232, %s233
      %p244 = scmp.eq.s32.totalorder %s25, 0
      %p245 = por %p243, %p244
      %p246 = scmp.ne.s32.totalorder %s232, %s233
      %p247 = scmp.eq.s32.totalorder %s26, 1
      %p248 = por %p246, %p247
      %p250 = scmp.ne.s32.totalorder %s233, %s249
      %p251 = scmp.eq.s32.totalorder %s26, 0
      %p252 = por %p250, %p251
      %p253 = scmp.le.s32.totalorder 1, %s20
      %p254 = scmp.lt.s32.totalorder %s20, 3
      %p255 = pnand %p253, %p254
      %p256 = pneg %p255
      // Predicated region
      $region9: #{tpu_custom_call.1} parent=5 // pred_check
        _
      $region10: #{tpu_custom_call.1} parent=5 // pred_check_branch
        %258 = sbr.rel (%p255) target = $region12
      $region11: #{tpu_custom_call.1} parent=5 // pred_region
        %s259 = ssub.s32 %s20, 1
        // Predicated region
        $region13: #{tpu_custom_call.1} parent=11 // pred_check
          %p260 = pneg %p93
        $region14: #{tpu_custom_call.1} parent=11 // pred_check_branch
          %262 = sbr.rel (%p260) target = $region16
        $region15: #{tpu_custom_call.1} parent=11 // pred_region
          %s264 = ssub.s32 256, 256
          %265 = vsyncadd [#allocation3], %s264
          %s266 = sshll.u32 [#allocation2], 4
          %s267 = int_to_ptr.vmem [resolvable:$true] %s266
          %272 = dma.hbm_to_vmem [thread:$0]  %s2, 256, %s267, [#allocation3], 128, 128, 8
        $region16: #{tpu_custom_call.1} parent=11 // pred_fallthru
          _
        // Predicated region
        $region17: #{tpu_custom_call.1} parent=11 // pred_check
          %p273 = pneg %p114
        $region18: #{tpu_custom_call.1} parent=11 // pred_check_branch
          %275 = sbr.rel (%p273) target = $region20
        $region19: #{tpu_custom_call.1} parent=11 // pred_region
          %s277 = ssub.s32 512, 512
          %278 = vsyncadd [#allocation6], %s277
          %s279 = sshll.u32 [#allocation5], 4
          %s280 = int_to_ptr.vmem [resolvable:$true] %s279
          %285 = dma.hbm_to_vmem [thread:$0]  %s3, 512, %s280, [#allocation6], 128, 128, 8
        $region20: #{tpu_custom_call.1} parent=11 // pred_fallthru
          _
        // Predicated region
        $region21: #{tpu_custom_call.1} parent=11 // pred_check
          %p286 = pneg %p135
        $region22: #{tpu_custom_call.1} parent=11 // pred_check_branch
          %288 = sbr.rel (%p286) target = $region24
        $region23: #{tpu_custom_call.1} parent=11 // pred_region
          %s290 = ssub.s32 256, 256
          %291 = vsyncadd [#allocation6], %s290
          %s292 = sshll.u32 [#allocation7], 4
          %s293 = int_to_ptr.vmem [resolvable:$true] %s292
          %298 = dma.hbm_to_vmem [thread:$0]  %s4, 256, %s293, [#allocation6], 128, 128, 8
        $region24: #{tpu_custom_call.1} parent=11 // pred_fallthru
          _
        // Predicated region
        $region25: #{tpu_custom_call.1} parent=11 // pred_check
          %p299 = pneg %p156
        $region26: #{tpu_custom_call.1} parent=11 // pred_check_branch
          %301 = sbr.rel (%p299) target = $region28
        $region27: #{tpu_custom_call.1} parent=11 // pred_region
          _
        $region28: #{tpu_custom_call.1} parent=11 // pred_fallthru
          _
        // Predicated region
        $region29: #{tpu_custom_call.1} parent=11 // pred_check
          %p302 = pneg %p177
        $region30: #{tpu_custom_call.1} parent=11 // pred_check_branch
          %304 = sbr.rel (%p302) target = $region32
        $region31: #{tpu_custom_call.1} parent=11 // pred_region
          _
        $region32: #{tpu_custom_call.1} parent=11 // pred_fallthru
          _
        // Predicated region
        $region33: #{tpu_custom_call.1} parent=11 // pred_check
          %p305 = pneg %p198
        $region34: #{tpu_custom_call.1} parent=11 // pred_check_branch
          %307 = sbr.rel (%p305) target = $region36
        $region35: #{tpu_custom_call.1} parent=11 // pred_region
          _
        $region36: #{tpu_custom_call.1} parent=11 // pred_fallthru
          _
        // Predicated region
        $region37: #{tpu_custom_call.1} parent=11 // pred_check
          %p308 = pneg %p219
        $region38: #{tpu_custom_call.1} parent=11 // pred_check_branch
          %310 = sbr.rel (%p308) target = $region40
        $region39: #{tpu_custom_call.1} parent=11 // pred_region
          _
        $region40: #{tpu_custom_call.1} parent=11 // pred_fallthru
          _
      $region12: #{tpu_custom_call.1} parent=5 // pred_fallthru
        _
      %p311 = scmp.lt.s32.totalorder %s20, 2
      // Predicated region
      $region41: #{tpu_custom_call.1} parent=5 // pred_check
        %p312 = pneg %p311
      $region42: #{tpu_custom_call.1} parent=5 // pred_check_branch
        %314 = sbr.rel (%p312) target = $region44
      $region43: #{tpu_custom_call.1} parent=5 // pred_region
        // Predicated region
        $region45: #{tpu_custom_call.1} parent=43 // pred_check
          %p315 = pneg %p40
        $region46: #{tpu_custom_call.1} parent=43 // pred_check_branch
          %317 = sbr.rel (%p315) target = $region48
        $region47: #{tpu_custom_call.1} parent=43 // pred_region
          %s318 = smul.u32 2, %s20
          %p319 = scmp.lt.s32.totalorder %s318, 3
          %s320 = scalar_select %p319, %s318, 3
          %s321 = smul.addr %s320, 8
          %s322 = scalar_lea.vmem %s0, %s321
          %s323 = smul.u32 2, %s20
        $region48: #{tpu_custom_call.1} parent=43 // pred_fallthru
          _
        // Predicated region
        $region49: #{tpu_custom_call.1} parent=43 // pred_check
          %p324 = pneg %p66
        $region50: #{tpu_custom_call.1} parent=43 // pred_check_branch
          %326 = sbr.rel (%p324) target = $region52
        $region51: #{tpu_custom_call.1} parent=43 // pred_region
          %s327 = smul.u32 2, %s20
          %p328 = scmp.lt.s32.totalorder %s327, 3
          %s329 = scalar_select %p328, %s327, 3
          %s330 = smul.addr %s329, 8
          %s331 = scalar_lea.vmem %s1, %s330
          %s332 = smul.u32 2, %s20
        $region52: #{tpu_custom_call.1} parent=43 // pred_fallthru
          _
      $region44: #{tpu_custom_call.1} parent=5 // pred_fallthru
        _
      %p333 = scmp.le.s32.totalorder 1, %s20
      %p334 = scmp.lt.s32.totalorder %s20, 3
      %p335 = pnand %p333, %p334
      %p336 = pneg %p335
      // Predicated region
      $region53: #{tpu_custom_call.1} parent=5 // pred_check
        _
      $region54: #{tpu_custom_call.1} parent=5 // pred_check_branch
        %338 = sbr.rel (%p335) target = $region56
      $region55: #{tpu_custom_call.1} parent=5 // pred_region
        %s339 = ssub.s32 %s20, 1
        // Predicated region
        $region57: #{tpu_custom_call.1} parent=55 // pred_check
          %p340 = pneg %p93
        $region58: #{tpu_custom_call.1} parent=55 // pred_check_branch
          %342 = sbr.rel (%p340) target = $region60
        $region59: #{tpu_custom_call.1} parent=55 // pred_region
          %343 = dma.done [#allocation3], 256
        $region60: #{tpu_custom_call.1} parent=55 // pred_fallthru
          _
        // Predicated region
        $region61: #{tpu_custom_call.1} parent=55 // pred_check
          %p344 = pneg %p114
        $region62: #{tpu_custom_call.1} parent=55 // pred_check_branch
          %346 = sbr.rel (%p344) target = $region64
        $region63: #{tpu_custom_call.1} parent=55 // pred_region
          %347 = dma.done [#allocation6], 512
        $region64: #{tpu_custom_call.1} parent=55 // pred_fallthru
          _
        // Predicated region
        $region65: #{tpu_custom_call.1} parent=55 // pred_check
          %p348 = pneg %p135
        $region66: #{tpu_custom_call.1} parent=55 // pred_check_branch
          %350 = sbr.rel (%p348) target = $region68
        $region67: #{tpu_custom_call.1} parent=55 // pred_region
          %351 = dma.done [#allocation6], 256
        $region68: #{tpu_custom_call.1} parent=55 // pred_fallthru
          _
        %s352 = smul.u32 2, %s25
        %p353 = scmp.lt.s32.totalorder %s352, 3
        %s354 = scalar_select %p353, %s352, 3
        %s355 = smul.addr %s354, 8
        %s356 = scalar_lea.vmem %s0, %s355
        %p357 = pneg %p46
        %p358 = pneg %p43
        %s359 = smul.u32 2, %s25
        %p360 = scmp.lt.s32.totalorder %s359, 3
        %s361 = scalar_select %p360, %s359, 3
        %s362 = smul.addr %s361, 8
        %s363 = scalar_lea.vmem %s1, %s362
        %p364 = pneg %p72
        %p365 = pneg %p69
        %p366 = pneg %p93
        %p367 = pneg %p90
        %p368 = pneg %p114
        %p369 = pneg %p111
        %p370 = pneg %p135
        %p371 = pneg %p132
        %p372 = pneg %p156
        %p373 = pneg %p153
        %p374 = pneg %p177
        %p375 = pneg %p174
        %p376 = pneg %p198
        %p377 = pneg %p195
        %p378 = pneg %p219
        %p379 = pneg %p216
        %p380 = pneg %p245
        %p381 = pneg %p242
        %s382 = sand.u32 %s232, 1
        %s383 = scalar_lea.sflag [#allocation4], %s382
        %s384 = sand.u32 %s232, 1
        %s385 = smul.addr %s384, 16
        %s386 = scalar_lea.vmem [#allocation8], %s385
        %s387 = smul.u32 2, %s25
        %p388 = scmp.lt.s32.totalorder %s387, 3
        %s389 = scalar_select %p388, %s387, 3
        %s390 = smul.addr %s389, 8
        %s391 = scalar_lea.vmem %s0, %s390
        %s392 = smul.u32 2, %s25
        %s393 = smul.u32 2, %s25
        %p394 = scmp.lt.s32.totalorder %s393, 3
        %s395 = scalar_select %p394, %s393, 3
        %s396 = smul.addr %s395, 8
        %s397 = scalar_lea.vmem %s1, %s396
        %s398 = smul.u32 2, %s25
        %s399 = smul.u32 2, %s25
        %v400 = vld [vmem:[%s391] sm:$0xff]
        %v401 = vld [vmem:[%s391 + $0x8] sm:$0xff]
        %v402 = vld [vmem:[%s397] sm:$0xff]
        %v403 = vld [vmem:[%s397 + $0x8] sm:$0xff]
        %v404 = vld [vmem:[#allocation2] sm:$0xff]
        %v405 = vld [vmem:[#allocation2 + $0x8] sm:$0xff]
        %v406 = vld [vmem:[#allocation5] sm:$0xff]
        %v407 = vld [vmem:[#allocation5 + $0x8] sm:$0xff]
        %v408 = vld [vmem:[#allocation5 + $0x10] sm:$0xff]
        %v409 = vld [vmem:[#allocation5 + $0x18] sm:$0xff]
        %vm410 = vcmask 261120
        %v412 = vsel %vm410, %v402, 0
        %v415 = vsel %vm410, %v403, 0
        %417 = vmatprep.subr.mxu0 0.0
        %418 = vmatpush1.msra.mxu0 %v406
        %419 = vmatprep.subr.mxu0 0.0
        %420 = vmatpush1.msra.mxu0 %v407
        %421 = vmatprep.subr.mxu0 0.0
        %422 = vmatpush1.msra.mxu0 %v408
        %423 = vmatprep.subr.mxu0 0.0
        %424 = vmatpush1.msra.mxu0 %v409
        %425 = vmatprep.subr.mxu0 0.0
        %426 = vmatpush1.msra.mxu0 0.0
        %427 = vmatprep.subr.mxu0 0.0
        %428 = vmatpush1.msra.mxu0 0.0
        %429 = vmatprep.subr.mxu0 0.0
        %430 = vmatpush1.msra.mxu0 0.0
        %431 = vmatprep.subr.mxu0 0.0
        %432 = vmatpush1.msra.mxu0 0.0
        %433 = vmatprep.subr.mxu0 0.0
        %434 = vmatpush1.msra.mxu0 0.0
        %435 = vmatprep.subr.mxu0 0.0
        %436 = vmatpush1.msra.mxu0 0.0
        %437 = vmatprep.subr.mxu0 0.0
        %438 = vmatpush1.msra.mxu0 0.0
        %439 = vmatprep.subr.mxu0 0.0
        %440 = vmatpush1.msra.mxu0 0.0
        %441 = vmatprep.subr.mxu0 0.0
        %442 = vmatpush1.msra.mxu0 0.0
        %443 = vmatprep.subr.mxu0 0.0
        %444 = vmatpush1.msra.mxu0 0.0
        %445 = vmatprep.subr.mxu0 0.0
        %446 = vmatpush1.msra.mxu0 0.0
        %447 = vmatprep.subr.mxu0 0.0
        %448 = vmatpush1.msra.mxu0 0.0
        %449 = vmatprep.subr.mxu0 0.0
        %450 = vmatpush1.msra.mxu0 0.0
        %451 = vmatprep.subr.mxu0 0.0
        %452 = vmatpush1.msra.mxu0 0.0
        %453 = vmatprep.subr.mxu0 0.0
        %454 = vmatpush1.msra.mxu0 0.0
        %455 = vmatprep.subr.mxu0 0.0
        %456 = vmatpush1.msra.mxu0 0.0
        %457 = vmatprep.subr.mxu0 0.0
        %458 = vmatpush1.msra.mxu0 0.0
        %459 = vmatprep.subr.mxu0 0.0
        %460 = vmatpush1.msra.mxu0 0.0
        %461 = vmatprep.subr.mxu0 0.0
        %462 = vmatpush1.msra.mxu0 0.0
        %463 = vmatprep.subr.mxu0 0.0
        %464 = vmatpush1.msra.mxu0 0.0
        %465 = vmatprep.subr.mxu0 0.0
        %466 = vmatpush1.msra.mxu0 0.0
        %467 = vmatprep.subr.mxu0 0.0
        %468 = vmatpush1.msra.mxu0 0.0
        %469 = vmatprep.subr.mxu0 0.0
        %470 = vmatpush1.msra.mxu0 0.0
        %471 = vmatprep.subr.mxu0 0.0
        %472 = vmatpush1.msra.mxu0 0.0
        %473 = vmatprep.subr.mxu0 0.0
        %474 = vmatpush1.msra.mxu0 0.0
        %475 = vmatprep.subr.mxu0 0.0
        %476 = vmatpush1.msra.mxu0 0.0
        %477 = vmatprep.subr.mxu0 0.0
        %478 = vmatpush1.msra.mxu0 0.0
        %479 = vmatprep.subr.mxu0 0.0
        %480 = vmatpush1.msra.mxu0 0.0
        %481 = vmatprep.mubr.f32.mxu0 0.0
        %482 = vmatmul.mubr.f32.gmra.mrb[0].mxu0 %v412
        %v483 = vpop.f32.mrb[0].mxu0
        %v484 = vadd.f32 0.0, %v483
        %v485 = vpop.f32.mrb[0].mxu0
        %486 = vmatprep.mubr.f32.mxu0 0.0
        %487 = vmatmul.mubr.f32.gmra.mrb[0].mxu0 %v415
        %v488 = vpop.f32.mrb[0].mxu0
        %v489 = vadd.f32 0.0, %v488
        %v490 = vpop.f32.mrb[0].mxu0
        %491 = vdwg.mxu0
        %vm492 = vcmask 130048
        %v494 = vsel %vm492, %v400, 0
        %v497 = vsel %vm492, %v401, 0
        %499 = vmatprep.subr.mxu0 0.0
        %500 = vmatpush1.msra.mxu0 %v404
        %501 = vmatprep.subr.mxu0 0.0
        %502 = vmatpush1.msra.mxu0 %v405
        %503 = vmatprep.subr.mxu0 0.0
        %504 = vmatpush1.msra.mxu0 0.0
        %505 = vmatprep.subr.mxu0 0.0
        %506 = vmatpush1.msra.mxu0 0.0
        %507 = vmatprep.subr.mxu0 0.0
        %508 = vmatpush1.msra.mxu0 0.0
        %509 = vmatprep.subr.mxu0 0.0
        %510 = vmatpush1.msra.mxu0 0.0
        %511 = vmatprep.subr.mxu0 0.0
        %512 = vmatpush1.msra.mxu0 0.0
        %513 = vmatprep.subr.mxu0 0.0
        %514 = vmatpush1.msra.mxu0 0.0
        %515 = vmatprep.subr.mxu0 0.0
        %516 = vmatpush1.msra.mxu0 0.0
        %517 = vmatprep.subr.mxu0 0.0
        %518 = vmatpush1.msra.mxu0 0.0
        %519 = vmatprep.subr.mxu0 0.0
        %520 = vmatpush1.msra.mxu0 0.0
        %521 = vmatprep.subr.mxu0 0.0
        %522 = vmatpush1.msra.mxu0 0.0
        %523 = vmatprep.subr.mxu0 0.0
        %524 = vmatpush1.msra.mxu0 0.0
        %525 = vmatprep.subr.mxu0 0.0
        %526 = vmatpush1.msra.mxu0 0.0
        %527 = vmatprep.subr.mxu0 0.0
        %528 = vmatpush1.msra.mxu0 0.0
        %529 = vmatprep.subr.mxu0 0.0
        %530 = vmatpush1.msra.mxu0 0.0
        %531 = vmatprep.subr.mxu0 0.0
        %532 = vmatpush1.msra.mxu0 0.0
        %533 = vmatprep.subr.mxu0 0.0
        %534 = vmatpush1.msra.mxu0 0.0
        %535 = vmatprep.subr.mxu0 0.0
        %536 = vmatpush1.msra.mxu0 0.0
        %537 = vmatprep.subr.mxu0 0.0
        %538 = vmatpush1.msra.mxu0 0.0
        %539 = vmatprep.subr.mxu0 0.0
        %540 = vmatpush1.msra.mxu0 0.0
        %541 = vmatprep.subr.mxu0 0.0
        %542 = vmatpush1.msra.mxu0 0.0
        %543 = vmatprep.subr.mxu0 0.0
        %544 = vmatpush1.msra.mxu0 0.0
        %545 = vmatprep.subr.mxu0 0.0
        %546 = vmatpush1.msra.mxu0 0.0
        %547 = vmatprep.subr.mxu0 0.0
        %548 = vmatpush1.msra.mxu0 0.0
        %549 = vmatprep.subr.mxu0 0.0
        %550 = vmatpush1.msra.mxu0 0.0
        %551 = vmatprep.subr.mxu0 0.0
        %552 = vmatpush1.msra.mxu0 0.0
        %553 = vmatprep.subr.mxu0 0.0
        %554 = vmatpush1.msra.mxu0 0.0
        %555 = vmatprep.subr.mxu0 0.0
        %556 = vmatpush1.msra.mxu0 0.0
        %557 = vmatprep.subr.mxu0 0.0
        %558 = vmatpush1.msra.mxu0 0.0
        %559 = vmatprep.subr.mxu0 0.0
        %560 = vmatpush1.msra.mxu0 0.0
        %561 = vmatprep.subr.mxu0 0.0
        %562 = vmatpush1.msra.mxu0 0.0
        %563 = vmatprep.mubr.f32.mxu0 0.0
        %564 = vmatmul.mubr.f32.gmra.mrb[0].mxu0 %v494
        %v565 = vpop.f32.mrb[0].mxu0
        %v566 = vadd.f32 %v484, %v565
        %v567 = vpop.f32.mrb[0].mxu0
        %568 = vmatprep.mubr.f32.mxu0 0.0
        %569 = vmatmul.mubr.f32.gmra.mrb[0].mxu0 %v497
        %v570 = vpop.f32.mrb[0].mxu0
        %v571 = vadd.f32 %v489, %v570
        %v572 = vpop.f32.mrb[0].mxu0
        %573 = vdwg.mxu0
        %v574 = vld [vmem:[%s6] sm:$0x1]
        %v576 = vlaneseq
        %v577 = vshrl.u32 %v576, 7
        %v578 = vsub.s32 0, %v577
        %v579 = vrot.slane %v574, %v578
        %v581 = vadd.f32 %v566, %v579
        %v582 = vadd.f32 %v571, %v579
        %v583 = vxor.u32 %v581, 2147483648
        %v584 = vxor.u32 %v582, 2147483648
        %v585 = vmul.f32 %v583, 1.442695
        %v586 = vpow.pop %v585
        %v587 = vmul.f32 %v584, 1.442695
        %v588 = vpow.pop %v587
        %v589 = vadd.f32 %v586, 1.0
        %v590 = vadd.f32 %v588, 1.0
        %v591 = vrcp.pop %v589
        %v592 = vmul.f32 1.0, %v591
        %v593 = vrcp.pop %v590
        %v594 = vmul.f32 1.0, %v593
        %v595 = vld [vmem:[#allocation7] sm:$0xff]
        %v596 = vld [vmem:[#allocation7 + $0x8] sm:$0xff]
        %v597 = vld [vmem:[%s5] sm:$0xff]
        %v598 = vld [vmem:[%s5 + $0x8] sm:$0xff]
        %v599 = vld [vmem:[%s5 + $0x10] sm:$0xff]
        %v600 = vld [vmem:[%s5 + $0x18] sm:$0xff]
        %v601 = vld [vmem:[%s7] sm:$0x1]
        %v603 = vlaneseq
        %v604 = vshrl.u32 %v603, 7
        %v605 = vsub.s32 0, %v604
        %v606 = vrot.slane %v601, %v605
        %608 = vmatprep.subr.mxu0 0.0
        %609 = vmatpush1.msra.mxu0 %v595
        %610 = vmatprep.subr.mxu0 0.0
        %611 = vmatpush1.msra.mxu0 %v596
        %612 = vmatprep.subr.mxu0 0.0
        %613 = vmatpush1.msra.mxu0 0.0
        %614 = vmatprep.subr.mxu0 0.0
        %615 = vmatpush1.msra.mxu0 0.0
        %616 = vmatprep.subr.mxu0 0.0
        %617 = vmatpush1.msra.mxu0 0.0
        %618 = vmatprep.subr.mxu0 0.0
        %619 = vmatpush1.msra.mxu0 0.0
        %620 = vmatprep.subr.mxu0 0.0
        %621 = vmatpush1.msra.mxu0 0.0
        %622 = vmatprep.subr.mxu0 0.0
        %623 = vmatpush1.msra.mxu0 0.0
        %624 = vmatprep.subr.mxu0 0.0
        %625 = vmatpush1.msra.mxu0 0.0
        %626 = vmatprep.subr.mxu0 0.0
        %627 = vmatpush1.msra.mxu0 0.0
        %628 = vmatprep.subr.mxu0 0.0
        %629 = vmatpush1.msra.mxu0 0.0
        %630 = vmatprep.subr.mxu0 0.0
        %631 = vmatpush1.msra.mxu0 0.0
        %632 = vmatprep.subr.mxu0 0.0
        %633 = vmatpush1.msra.mxu0 0.0
        %634 = vmatprep.subr.mxu0 0.0
        %635 = vmatpush1.msra.mxu0 0.0
        %636 = vmatprep.subr.mxu0 0.0
        %637 = vmatpush1.msra.mxu0 0.0
        %638 = vmatprep.subr.mxu0 0.0
        %639 = vmatpush1.msra.mxu0 0.0
        %640 = vmatprep.subr.mxu0 0.0
        %641 = vmatpush1.msra.mxu0 0.0
        %642 = vmatprep.subr.mxu0 0.0
        %643 = vmatpush1.msra.mxu0 0.0
        %644 = vmatprep.subr.mxu0 0.0
        %645 = vmatpush1.msra.mxu0 0.0
        %646 = vmatprep.subr.mxu0 0.0
        %647 = vmatpush1.msra.mxu0 0.0
        %648 = vmatprep.subr.mxu0 0.0
        %649 = vmatpush1.msra.mxu0 0.0
        %650 = vmatprep.subr.mxu0 0.0
        %651 = vmatpush1.msra.mxu0 0.0
        %652 = vmatprep.subr.mxu0 0.0
        %653 = vmatpush1.msra.mxu0 0.0
        %654 = vmatprep.subr.mxu0 0.0
        %655 = vmatpush1.msra.mxu0 0.0
        %656 = vmatprep.subr.mxu0 0.0
        %657 = vmatpush1.msra.mxu0 0.0
        %658 = vmatprep.subr.mxu0 0.0
        %659 = vmatpush1.msra.mxu0 0.0
        %660 = vmatprep.subr.mxu0 0.0
        %661 = vmatpush1.msra.mxu0 0.0
        %662 = vmatprep.subr.mxu0 0.0
        %663 = vmatpush1.msra.mxu0 0.0
        %664 = vmatprep.subr.mxu0 0.0
        %665 = vmatpush1.msra.mxu0 0.0
        %666 = vmatprep.subr.mxu0 0.0
        %667 = vmatpush1.msra.mxu0 0.0
        %668 = vmatprep.subr.mxu0 0.0
        %669 = vmatpush1.msra.mxu0 0.0
        %670 = vmatprep.subr.mxu0 0.0
        %671 = vmatpush1.msra.mxu0 0.0
        %672 = vmatprep.mubr.f32.mxu0 0.0
        %673 = vmatmul.mubr.f32.gmra.mrb[0].mxu0 %v494
        %v674 = vpop.f32.mrb[0].mxu0
        %v675 = vadd.f32 %v606, %v674
        %v676 = vpop.f32.mrb[0].mxu0
        %677 = vmatprep.mubr.f32.mxu0 0.0
        %678 = vmatmul.mubr.f32.gmra.mrb[0].mxu0 %v497
        %v679 = vpop.f32.mrb[0].mxu0
        %v680 = vadd.f32 %v606, %v679
        %v681 = vpop.f32.mrb[0].mxu0
        %682 = vdwg.mxu0
        %v683 = vld [vmem:[%s8] sm:$0x1]
        %v685 = vlaneseq
        %v686 = vshrl.u32 %v685, 7
        %v687 = vsub.s32 0, %v686
        %v688 = vrot.slane %v683, %v687
        %690 = vmatprep.subr.mxu0 0.0
        %691 = vmatpush1.msra.mxu0 %v597
        %692 = vmatprep.subr.mxu0 0.0
        %693 = vmatpush1.msra.mxu0 %v598
        %694 = vmatprep.subr.mxu0 0.0
        %695 = vmatpush1.msra.mxu0 %v599
        %696 = vmatprep.subr.mxu0 0.0
        %697 = vmatpush1.msra.mxu0 %v600
        %698 = vmatprep.subr.mxu0 0.0
        %699 = vmatpush1.msra.mxu0 0.0
        %700 = vmatprep.subr.mxu0 0.0
        %701 = vmatpush1.msra.mxu0 0.0
        %702 = vmatprep.subr.mxu0 0.0
        %703 = vmatpush1.msra.mxu0 0.0
        %704 = vmatprep.subr.mxu0 0.0
        %705 = vmatpush1.msra.mxu0 0.0
        %706 = vmatprep.subr.mxu0 0.0
        %707 = vmatpush1.msra.mxu0 0.0
        %708 = vmatprep.subr.mxu0 0.0
        %709 = vmatpush1.msra.mxu0 0.0
        %710 = vmatprep.subr.mxu0 0.0
        %711 = vmatpush1.msra.mxu0 0.0
        %712 = vmatprep.subr.mxu0 0.0
        %713 = vmatpush1.msra.mxu0 0.0
        %714 = vmatprep.subr.mxu0 0.0
        %715 = vmatpush1.msra.mxu0 0.0
        %716 = vmatprep.subr.mxu0 0.0
        %717 = vmatpush1.msra.mxu0 0.0
        %718 = vmatprep.subr.mxu0 0.0
        %719 = vmatpush1.msra.mxu0 0.0
        %720 = vmatprep.subr.mxu0 0.0
        %721 = vmatpush1.msra.mxu0 0.0
        %722 = vmatprep.subr.mxu0 0.0
        %723 = vmatpush1.msra.mxu0 0.0
        %724 = vmatprep.subr.mxu0 0.0
        %725 = vmatpush1.msra.mxu0 0.0
        %726 = vmatprep.subr.mxu0 0.0
        %727 = vmatpush1.msra.mxu0 0.0
        %728 = vmatprep.subr.mxu0 0.0
        %729 = vmatpush1.msra.mxu0 0.0
        %730 = vmatprep.subr.mxu0 0.0
        %731 = vmatpush1.msra.mxu0 0.0
        %732 = vmatprep.subr.mxu0 0.0
        %733 = vmatpush1.msra.mxu0 0.0
        %734 = vmatprep.subr.mxu0 0.0
        %735 = vmatpush1.msra.mxu0 0.0
        %736 = vmatprep.subr.mxu0 0.0
        %737 = vmatpush1.msra.mxu0 0.0
        %738 = vmatprep.subr.mxu0 0.0
        %739 = vmatpush1.msra.mxu0 0.0
        %740 = vmatprep.subr.mxu0 0.0
        %741 = vmatpush1.msra.mxu0 0.0
        %742 = vmatprep.subr.mxu0 0.0
        %743 = vmatpush1.msra.mxu0 0.0
        %744 = vmatprep.subr.mxu0 0.0
        %745 = vmatpush1.msra.mxu0 0.0
        %746 = vmatprep.subr.mxu0 0.0
        %747 = vmatpush1.msra.mxu0 0.0
        %748 = vmatprep.subr.mxu0 0.0
        %749 = vmatpush1.msra.mxu0 0.0
        %750 = vmatprep.subr.mxu0 0.0
        %751 = vmatpush1.msra.mxu0 0.0
        %752 = vmatprep.subr.mxu0 0.0
        %753 = vmatpush1.msra.mxu0 0.0
        %754 = vmatprep.mubr.f32.mxu0 0.0
        %755 = vmatmul.mubr.f32.gmra.mrb[0].mxu0 %v412
        %v756 = vpop.f32.mrb[0].mxu0
        %v757 = vadd.f32 %v688, %v756
        %v758 = vpop.f32.mrb[0].mxu0
        %759 = vmatprep.mubr.f32.mxu0 0.0
        %760 = vmatmul.mubr.f32.gmra.mrb[0].mxu0 %v415
        %v761 = vpop.f32.mrb[0].mxu0
        %v762 = vadd.f32 %v688, %v761
        %v763 = vpop.f32.mrb[0].mxu0
        %764 = vdwg.mxu0
        %v765 = vmul.f32 %v592, %v757
        %v766 = vmul.f32 %v594, %v762
        %v767 = vadd.f32 %v675, %v765
        %v768 = vadd.f32 %v680, %v766
        %v769 = vtanh.pop %v767
        %v770 = vtanh.pop %v768
        %v771 = vsub.f32 %v402, %v769
        %v772 = vsub.f32 %v403, %v770
        %775 = vrot.lane.b32.xlu0 %v771, 32
        %v776 = vpop.permute.xlu0 %775
        %777 = vrot.lane.b32.xlu0 %v772, 32
        %v778 = vpop.permute.xlu0 %777
        %v781 = vmul.f32 %v592, %v776
        %v782 = vmul.f32 %v594, %v778
        %785 = vrot.lane.b32.xlu0 %v781, 96
        %v786 = vpop.permute.xlu0 %785
        %787 = vrot.lane.b32.xlu0 %v782, 96
        %v788 = vpop.permute.xlu0 %787
        %v791 = vadd.f32 %v769, %v786
        %v792 = vadd.f32 %v770, %v788
        %793 = vst.msk [vmem:[%s386] sm:$0xff] %vm410, %v791
        %794 = vst.msk [vmem:[%s386 + $0x8] sm:$0xff] %vm410, %v792
        %s795 = sand.u32 %s232, 1
        %s796 = scalar_lea.sflag [#allocation4], %s795
        %s797 = sand.u32 %s232, 1
        %s798 = smul.addr %s797, 16
        %s799 = scalar_lea.vmem [#allocation8], %s798
        // Predicated region
        $region69: #{tpu_custom_call.1} parent=55 // pred_check
          %p800 = pneg %p242
        $region70: #{tpu_custom_call.1} parent=55 // pred_check_branch
          %802 = sbr.rel (%p800) target = $region72
        $region71: #{tpu_custom_call.1} parent=55 // pred_region
          %s803 = smul.u32 2, %s25
          %s805 = ssub.s32 256, 256
          %806 = vsyncadd %s796, %s805
          %s807 = smul.addr %s803, 128
          %s808 = scalar_lea.hbm %s9, %s807
          %s809 = sshll.u32 %s799, 4
          %s810 = int_to_ptr.vmem [resolvable:$true] %s809
          %815 = dma.vmem_to_hbm [thread:$0]  %s810, 256, %s808, %s796, 128, 128, 8
        $region72: #{tpu_custom_call.1} parent=55 // pred_fallthru
          _
      $region56: #{tpu_custom_call.1} parent=5 // pred_fallthru
        _
      %p816 = scmp.le.s32.totalorder 2, %s20
      // Predicated region
      $region73: #{tpu_custom_call.1} parent=5 // pred_check
        %p817 = pneg %p816
      $region74: #{tpu_custom_call.1} parent=5 // pred_check_branch
        %819 = sbr.rel (%p817) target = $region76
      $region75: #{tpu_custom_call.1} parent=5 // pred_region
        %s820 = ssub.s32 %s20, 2
        // Predicated region
        $region77: #{tpu_custom_call.1} parent=75 // pred_check
          %p821 = pneg %p248
        $region78: #{tpu_custom_call.1} parent=75 // pred_check_branch
          %823 = sbr.rel (%p821) target = $region80
        $region79: #{tpu_custom_call.1} parent=75 // pred_region
          %s824 = sand.u32 %s233, 1
          %s825 = scalar_lea.sflag [#allocation4], %s824
          %s826 = sand.u32 %s233, 1
          %s827 = smul.addr %s826, 16
          %s828 = scalar_lea.vmem [#allocation8], %s827
          %829 = dma.done %s825, 256
        $region80: #{tpu_custom_call.1} parent=75 // pred_fallthru
          _
      $region76: #{tpu_custom_call.1} parent=5 // pred_fallthru
        _
    $region6: #{tpu_custom_call.1} parent=1 // loop_footer
      %s24 = sadd.s32 1, %s20
    $region7: #{tpu_custom_call.1} parent=1 // loop_footer_branch
      %19 = sbr.rel target = $region3
    $region8: #{tpu_custom_call.1} parent=1 // loop_exit
      _
    %830 = vsyncpa [#allocation3], 1
    %s831 = scalar_lea.sflag [#allocation3], 1
    %832 = vsyncpa %s831, 1
    %833 = vsyncpa [#allocation6], 1
    %834 = vsyncpa [#allocation4], 1
    %s835 = scalar_lea.sflag [#allocation4], 1
    %836 = vsyncpa %s835, 1

</llo_original>
